<compile_context>
chip_gen: v7x
topology: tpu7x:2x2x1
jax: 0.10.0
libtpu: 0.0.40
codegen_flags: <defaults>
</compile_context>

<pallas_src>
from functools import partial

import jax
import jax.numpy as jnp
from jax.experimental import pallas as pl
from jax.experimental.pallas import tpu as pltpu

BN_EPS = 1e-5
HIDDEN = 400  # hidden_dims = [400, 400] hardcoded in the PyTorch module


def _round_up(n, m):
    return ((n + m - 1) // m) * m


# ---------------------------------------------------------------------------
# Kernel
# ---------------------------------------------------------------------------
def draftnet_kernel(x_ref, pack_ref,
                    w_in_ref, b_in_ref,
                    w_h_ref, b_h_ref,
                    w_out_ref, b_out_ref,
                    out_ref):
    # x / weights are bf16; biases (BN already folded into w_out/b_out) are f32.

    # input_layer (dropout_input is identity in eval mode)
    h = jnp.dot(x_ref[...], w_in_ref[...],
                preferred_element_type=jnp.float32) + b_in_ref[...]

    # hidden_layers[0]
    h = jnp.dot(h.astype(jnp.bfloat16), w_h_ref[...],
                preferred_element_type=jnp.float32) + b_h_ref[...]

    # exact GELU (matches torch F.gelu approximate='none'); dropout_layer is identity
    inv_sqrt2 = jnp.float32(0.7071067811865476)
    h = 0.5 * h * (1.0 + jax.lax.erf(h * inv_sqrt2))

    # norms[0] (eval-mode BatchNorm1d) is folded into w_out/b_out host-side.

    # output_layer
    o = jnp.dot(h.astype(jnp.bfloat16), w_out_ref[...],
                preferred_element_type=jnp.float32) + b_out_ref[...]

    # elementwise pack mask
    out_ref[...] = o * pack_ref[...]


# ---------------------------------------------------------------------------
# Host-side parameter prep: fold BN, zero-pad to lane-aligned shapes, cast to bf16
# ---------------------------------------------------------------------------
def prepare_kernel_params(params, C_pad, H_pad):
    # Fold eval-mode BatchNorm into the output linear (exact in f32).
    s = params["gamma"] / jnp.sqrt(params["running_var"] + BN_EPS)            # [H]
    w_out_f = params["w_out"] * s[:, None]                                    # [H, C]
    b_out_f = params["b_out"] + (params["beta"] - params["running_mean"] * s) @ params["w_out"]

    def pad2(a, rows, cols):
        return jnp.pad(a, ((0, rows - a.shape[0]), (0, cols - a.shape[1])))

    def pad1(a, n):
        return jnp.pad(a, (0, n - a.shape[0]))

    return {
        # weights stored as [in_features, out_features] (torch W^T), padded, bf16
        "w_in": pad2(params["w_in"], C_pad, H_pad).astype(jnp.bfloat16),
        "b_in": pad1(params["b_in"], H_pad).reshape(1, H_pad).astype(jnp.float32),
        "w_h": pad2(params["w_h"], H_pad, H_pad).astype(jnp.bfloat16),
        "b_h": pad1(params["b_h"], H_pad).reshape(1, H_pad).astype(jnp.float32),
        "w_out": pad2(w_out_f, H_pad, C_pad).astype(jnp.bfloat16),
        "b_out": pad1(b_out_f, C_pad).reshape(1, C_pad).astype(jnp.float32),
    }


# ---------------------------------------------------------------------------
# Wrapper
# ---------------------------------------------------------------------------
@partial(jax.jit, static_argnames=("block_b",))
def draftnet_forward(x, pack, params, *, block_b=256):
    B, C = x.shape
    H = params["w_in"].shape[1]
    C_pad = _round_up(C, 128)
    H_pad = _round_up(H, 128)          # 400 -> 512

    kp = prepare_kernel_params(params, C_pad, H_pad)

    # Batch tile: divisible by 8 (sublanes); larger blocks when B is large.
    tm = block_b if B > block_b else _round_up(max(B, 8), 8)
    n_tiles = pl.cdiv(B, tm)
    B_pad = n_tiles * tm

    x_p = jnp.zeros((B_pad, C_pad), jnp.bfloat16).at[:B, :C].set(x.astype(jnp.bfloat16))
    pack_p = jnp.zeros((B_pad, C_pad), jnp.float32).at[:B, :C].set(pack.astype(jnp.float32))

    batch_spec = pl.BlockSpec((tm, C_pad), lambda i: (i, 0))
    const = lambda i: (0, 0)           # weights / biases stay VMEM-resident across tiles

    out = pl.pallas_call(
        draftnet_kernel,
        out_shape=jax.ShapeDtypeStruct((B_pad, C_pad), jnp.float32),
        grid=(n_tiles,),
        in_specs=[
            batch_spec,                                   # x
            batch_spec,                                   # pack
            pl.BlockSpec((C_pad, H_pad), const),          # w_in
            pl.BlockSpec((1, H_pad), const),              # b_in
            pl.BlockSpec((H_pad, H_pad), const),          # w_h
            pl.BlockSpec((1, H_pad), const),              # b_h
            pl.BlockSpec((H_pad, C_pad), const),          # w_out (BN folded)
            pl.BlockSpec((1, C_pad), const),              # b_out (BN folded)
        ],
        out_specs=batch_spec,
        compiler_params=pltpu.CompilerParams(
            dimension_semantics=("parallel",)),
    )(x_p, pack_p, kp["w_in"], kp["b_in"], kp["w_h"], kp["b_h"],
      kp["w_out"], kp["b_out"])

    return out[:B, :C]


# ---------------------------------------------------------------------------
# Parameter init (mirrors the torch module's shapes; weights stored as W^T)
# ---------------------------------------------------------------------------
def init_params(key, num_cards, hidden=HIDDEN):
    ks = jax.random.split(key, 6)
    scale_in = 1.0 / jnp.sqrt(num_cards)
    scale_h = 1.0 / jnp.sqrt(hidden)
    return {
        "w_in": jax.random.uniform(ks[0], (num_cards, hidden), jnp.float32,
                                   -scale_in, scale_in),
        "b_in": jax.random.uniform(ks[1], (hidden,), jnp.float32, -scale_in, scale_in),
        "w_h": jax.random.uniform(ks[2], (hidden, hidden), jnp.float32,
                                  -scale_h, scale_h),
        "b_h": jax.random.uniform(ks[3], (hidden,), jnp.float32, -scale_h, scale_h),
        "gamma": jnp.ones((hidden,), jnp.float32),
        "beta": jnp.zeros((hidden,), jnp.float32),
        "running_mean": jnp.zeros((hidden,), jnp.float32),
        "running_var": jnp.ones((hidden,), jnp.float32),
        "w_out": jax.random.uniform(ks[4], (hidden, num_cards), jnp.float32,
                                    -scale_h, scale_h),
        "b_out": jax.random.uniform(ks[5], (num_cards,), jnp.float32,
                                    -scale_h, scale_h),
    }


# ---------------------------------------------------------------------------
# References
# ---------------------------------------------------------------------------
def draftnet_reference(x, pack, params):
    """Pure-JAX f32 reference for the original eval-mode module semantics."""
    h = x @ params["w_in"] + params["b_in"]
    h = h @ params["w_h"] + params["b_h"]
    h = 0.5 * h * (1.0 + jax.lax.erf(h / jnp.sqrt(2.0)))
    h = (h - params["running_mean"]) / jnp.sqrt(params["running_var"] + BN_EPS)
    h = h * params["gamma"] + params["beta"]
    o = h @ params["w_out"] + params["b_out"]
    return o * pack


def draftnet_reference_bf16(x, pack, params):
    """Pure-JAX reference mirroring the kernel's exact math path
    (BN folded, zero padding, bf16 matmul operands, f32 accumulate/epilogue)."""
    C, H = params["w_in"].shape
    C_pad = _round_up(C, 128)
    H_pad = _round_up(H, 128)
    kp = prepare_kernel_params(params, C_pad, H_pad)
    B = x.shape[0]
    x_p = jnp.zeros((B, C_pad), jnp.bfloat16).at[:, :C].set(x.astype(jnp.bfloat16))
    pack_p = jnp.zeros((B, C_pad), jnp.float32).at[:, :C].set(pack.astype(jnp.float32))
    h = jnp.dot(x_p, kp["w_in"], preferred_element_type=jnp.float32) + kp["b_in"]
    h = jnp.dot(h.astype(jnp.bfloat16), kp["w_h"], preferred_element_type=jnp.float32) + kp["b_h"]
    h = 0.5 * h * (1.0 + jax.lax.erf(h * jnp.float32(0.7071067811865476)))
    o = jnp.dot(h.astype(jnp.bfloat16), kp["w_out"], preferred_element_type=jnp.float32) + kp["b_out"]
    return (o * pack_p)[:, :C]


if __name__ == "__main__":
    key = jax.random.PRNGKey(0)
    k_param, k_x, k_pack = jax.random.split(key, 3)

    # 40 drafters, 300-card set (C deliberately not 128-aligned to exercise padding).
    B, C = 40, 300
    params = init_params(k_param, C)

    # x: pool counts (non-negative floats); pack: 0/1 mask of cards in the pack
    x = jax.random.uniform(k_x, (B, C), jnp.float32, 0.0, 3.0)
    pack = (jax.random.uniform(k_pack, (B, C)) < 0.05).astype(jnp.float32)

    # block_b=16 -> batch padded to 48, grid of 3 tiles (exercises the batch grid).
    out = draftnet_forward(x, pack, params, block_b=16)
    out = jax.block_until_ready(out)
    assert out.shape == (B, C)

    # Tight check vs a JAX reference that mirrors the kernel math exactly.
    ref_bf16 = draftnet_reference_bf16(x, pack, params)
    assert jnp.allclose(out, ref_bf16, atol=5e-3, rtol=5e-3), "mismatch vs bf16 reference"

    # Semantic check vs the original f32 eval-mode forward (bf16 weight precision).
    ref_f32 = draftnet_reference(x, pack, params)
    assert jnp.allclose(out, ref_f32, atol=1e-1, rtol=1e-1), "mismatch vs f32 reference"

    print("KERNEL_OK")
</pallas_src>

<mosaic_0001>
module attributes {stable_mosaic.version = 11 : i64} {
  func.func @draftnet_kernel(%arg0: i32, %arg1: memref<16x384xbf16, #tpu.memory_space<vmem>>, %arg2: memref<16x384xf32, #tpu.memory_space<vmem>>, %arg3: memref<384x512xbf16, #tpu.memory_space<vmem>>, %arg4: memref<1x512xf32, #tpu.memory_space<vmem>>, %arg5: memref<512x512xbf16, #tpu.memory_space<vmem>>, %arg6: memref<1x512xf32, #tpu.memory_space<vmem>>, %arg7: memref<512x384xbf16, #tpu.memory_space<vmem>>, %arg8: memref<1x384xf32, #tpu.memory_space<vmem>>, %arg9: memref<16x384xf32, #tpu.memory_space<vmem>>) attributes {dimension_semantics = [#tpu.dimension_semantics<parallel>], iteration_bounds = array<i64: 3>, scalar_prefetch = 0 : i64, scratch_operands = 0 : i64, tpu.core_type = #tpu.core_type<tc>, window_params = [{transform_indices = @transform_0, window_bounds = array<i64: 16, 384>}, {transform_indices = @transform_1, window_bounds = array<i64: 16, 384>}, {pipeline_mode = #tpu.pipeline_mode<synchronous>, transform_indices = @transform_2, window_bounds = array<i64: 384, 512>}, {pipeline_mode = #tpu.pipeline_mode<synchronous>, transform_indices = @transform_3, window_bounds = array<i64: 1, 512>}, {pipeline_mode = #tpu.pipeline_mode<synchronous>, transform_indices = @transform_4, window_bounds = array<i64: 512, 512>}, {pipeline_mode = #tpu.pipeline_mode<synchronous>, transform_indices = @transform_5, window_bounds = array<i64: 1, 512>}, {pipeline_mode = #tpu.pipeline_mode<synchronous>, transform_indices = @transform_6, window_bounds = array<i64: 512, 384>}, {pipeline_mode = #tpu.pipeline_mode<synchronous>, transform_indices = @transform_7, window_bounds = array<i64: 1, 384>}, {transform_indices = @transform_8, window_bounds = array<i64: 16, 384>}]} {
    %c0 = arith.constant 0 : index
    %c0_0 = arith.constant 0 : index
    %0 = vector.load %arg1[%c0, %c0_0] : memref<16x384xbf16, #tpu.memory_space<vmem>>, vector<16x384xbf16>
    %c0_1 = arith.constant 0 : index
    %c0_2 = arith.constant 0 : index
    %1 = vector.load %arg3[%c0_1, %c0_2] : memref<384x512xbf16, #tpu.memory_space<vmem>>, vector<384x512xbf16>
    %cst = arith.constant dense<0.000000e+00> : vector<16x512xf32>
    %2 = tpu.matmul %0, %1, %cst {dimension_numbers = #tpu.dot_dimension_numbers<[1], [0], [0], [1], [0, 0, 1, 1], [], []>} : vector<16x384xbf16>, vector<384x512xbf16>, vector<16x512xf32> -> vector<16x512xf32>
    %c0_3 = arith.constant 0 : index
    %c0_4 = arith.constant 0 : index
    %3 = vector.load %arg4[%c0_3, %c0_4] : memref<1x512xf32, #tpu.memory_space<vmem>>, vector<1x512xf32>
    %4 = vector.broadcast %3 : vector<1x512xf32> to vector<16x512xf32>
    %5 = arith.addf %2, %4 : vector<16x512xf32>
    %6 = arith.truncf %5 : vector<16x512xf32> to vector<16x512xbf16>
    %c0_5 = arith.constant 0 : index
    %c0_6 = arith.constant 0 : index
    %7 = vector.load %arg5[%c0_5, %c0_6] : memref<512x512xbf16, #tpu.memory_space<vmem>>, vector<512x512xbf16>
    %cst_7 = arith.constant dense<0.000000e+00> : vector<16x512xf32>
    %8 = tpu.matmul %6, %7, %cst_7 {dimension_numbers = #tpu.dot_dimension_numbers<[1], [0], [0], [1], [0, 0, 1, 1], [], []>} : vector<16x512xbf16>, vector<512x512xbf16>, vector<16x512xf32> -> vector<16x512xf32>
    %c0_8 = arith.constant 0 : index
    %c0_9 = arith.constant 0 : index
    %9 = vector.load %arg6[%c0_8, %c0_9] : memref<1x512xf32, #tpu.memory_space<vmem>>, vector<1x512xf32>
    %10 = vector.broadcast %9 : vector<1x512xf32> to vector<16x512xf32>
    %11 = arith.addf %8, %10 : vector<16x512xf32>
    %cst_10 = arith.constant 5.000000e-01 : f32
    %12 = vector.broadcast %cst_10 : f32 to vector<16x512xf32>
    %13 = arith.mulf %12, %11 : vector<16x512xf32>
    %cst_11 = arith.constant 0.707106769 : f32
    %14 = vector.broadcast %cst_11 : f32 to vector<16x512xf32>
    %15 = arith.mulf %11, %14 : vector<16x512xf32>
    %16 = math.erf %15 : vector<16x512xf32>
    %cst_12 = arith.constant 1.000000e+00 : f32
    %17 = vector.broadcast %cst_12 : f32 to vector<16x512xf32>
    %18 = arith.addf %17, %16 : vector<16x512xf32>
    %19 = arith.mulf %13, %18 : vector<16x512xf32>
    %20 = arith.truncf %19 : vector<16x512xf32> to vector<16x512xbf16>
    %c0_13 = arith.constant 0 : index
    %c0_14 = arith.constant 0 : index
    %21 = vector.load %arg7[%c0_13, %c0_14] : memref<512x384xbf16, #tpu.memory_space<vmem>>, vector<512x384xbf16>
    %cst_15 = arith.constant dense<0.000000e+00> : vector<16x384xf32>
    %22 = tpu.matmul %20, %21, %cst_15 {dimension_numbers = #tpu.dot_dimension_numbers<[1], [0], [0], [1], [0, 0, 1, 1], [], []>} : vector<16x512xbf16>, vector<512x384xbf16>, vector<16x384xf32> -> vector<16x384xf32>
    %c0_16 = arith.constant 0 : index
    %c0_17 = arith.constant 0 : index
    %23 = vector.load %arg8[%c0_16, %c0_17] : memref<1x384xf32, #tpu.memory_space<vmem>>, vector<1x384xf32>
    %24 = vector.broadcast %23 : vector<1x384xf32> to vector<16x384xf32>
    %25 = arith.addf %22, %24 : vector<16x384xf32>
    %c0_18 = arith.constant 0 : index
    %c0_19 = arith.constant 0 : index
    %26 = vector.load %arg2[%c0_18, %c0_19] : memref<16x384xf32, #tpu.memory_space<vmem>>, vector<16x384xf32>
    %27 = arith.mulf %25, %26 : vector<16x384xf32>
    %c0_20 = arith.constant 0 : index
    %c0_21 = arith.constant 0 : index
    %28 = vector.load %arg9[%c0_20, %c0_21] : memref<16x384xf32, #tpu.memory_space<vmem>>, vector<16x384xf32>
    tpu.vector_store %arg9[%c0_20, %c0_21], %27 {strides = array<i32>} : memref<16x384xf32, #tpu.memory_space<vmem>>, vector<16x384xf32>,
    return
  }
  func.func @transform_0(%arg0: i32) -> (i32, i32) {
    %c0_i32 = arith.constant 0 : i32
    %c0_i32_0 = arith.constant 0 : i32
    return %arg0, %c0_i32 : i32, i32
  }
  func.func @transform_1(%arg0: i32) -> (i32, i32) {
    %c0_i32 = arith.constant 0 : i32
    %c0_i32_0 = arith.constant 0 : i32
    return %arg0, %c0_i32 : i32, i32
  }
  func.func @transform_2(%arg0: i32) -> (i32, i32) {
    %c0_i32 = arith.constant 0 : i32
    %c0_i32_0 = arith.constant 0 : i32
    %c0_i32_1 = arith.constant 0 : i32
    return %c0_i32, %c0_i32_0 : i32, i32
  }
  func.func @transform_3(%arg0: i32) -> (i32, i32) {
    %c0_i32 = arith.constant 0 : i32
    %c0_i32_0 = arith.constant 0 : i32
    %c0_i32_1 = arith.constant 0 : i32
    return %c0_i32, %c0_i32_0 : i32, i32
  }
  func.func @transform_4(%arg0: i32) -> (i32, i32) {
    %c0_i32 = arith.constant 0 : i32
    %c0_i32_0 = arith.constant 0 : i32
    %c0_i32_1 = arith.constant 0 : i32
    return %c0_i32, %c0_i32_0 : i32, i32
  }
  func.func @transform_5(%arg0: i32) -> (i32, i32) {
    %c0_i32 = arith.constant 0 : i32
    %c0_i32_0 = arith.constant 0 : i32
    %c0_i32_1 = arith.constant 0 : i32
    return %c0_i32, %c0_i32_0 : i32, i32
  }
  func.func @transform_6(%arg0: i32) -> (i32, i32) {
    %c0_i32 = arith.constant 0 : i32
    %c0_i32_0 = arith.constant 0 : i32
    %c0_i32_1 = arith.constant 0 : i32
    return %c0_i32, %c0_i32_0 : i32, i32
  }
  func.func @transform_7(%arg0: i32) -> (i32, i32) {
    %c0_i32 = arith.constant 0 : i32
    %c0_i32_0 = arith.constant 0 : i32
    %c0_i32_1 = arith.constant 0 : i32
    return %c0_i32, %c0_i32_0 : i32, i32
  }
  func.func @transform_8(%arg0: i32) -> (i32, i32) {
    %c0_i32 = arith.constant 0 : i32
    %c0_i32_0 = arith.constant 0 : i32
    return %arg0, %c0_i32 : i32, i32
  }
}

</mosaic_0001>

<llo_original>
// kernel: draftnet_forward.1
$region0: #{draftnet_forward.1}
  #allocation0 [shape = 'u32[]', space=smem, size = 0x4, offset = 0x4, fixed_abs, tag = 'smem constant byte address 0x4 - core index']
  #allocation1 [shape = 'u32[144,128]{1,0:T(1,128)}', space=vmem, size = 0x12000, scoped, tag = 'internal scratch']
  %s0 = inlined_call_operand.vmem [shape: bf16[48,384], index: 0, kind: input, shape index: {}]
  %s1 = inlined_call_operand.vmem [shape: f32[48,384], index: 1, kind: input, shape index: {}]
  %s2 = inlined_call_operand.vmem [shape: bf16[384,512], index: 2, kind: input, shape index: {}]
  %s3 = inlined_call_operand.vmem [shape: f32[1,512], index: 3, kind: input, shape index: {}]
  %s4 = inlined_call_operand.vmem [shape: bf16[512,512], index: 4, kind: input, shape index: {}]
  %s5 = inlined_call_operand.vmem [shape: f32[1,512], index: 5, kind: input, shape index: {}]
  %s6 = inlined_call_operand.vmem [shape: bf16[512,384], index: 6, kind: input, shape index: {}]
  %s7 = inlined_call_operand.vmem [shape: f32[1,384], index: 7, kind: input, shape index: {}]
  %s8 = inlined_call_operand.vmem [shape: f32[48,384], index: 8, kind: output, shape index: {}]
  %s9 = sld [smem:[#allocation0]]
  $region65: #{draftnet_forward.1} parent=0
    _
  %s11 = ssub.s32 1, %s9
  %s12 = scalar_select 0, %s11, %s9
  loop: start=0, step=1, limit=5
  $region2: #{draftnet_forward.1} parent=0 // loop_pre_header
    _
  $region3: #{draftnet_forward.1} parent=0 // loop_header
    %s14 = sphi 0, %s18
    %p15 = scmp.ge.s32.totalorder %s14, 5
    %s24 = sphi 0, %s26
    %s27 = sphi 0, %s24
    %s28 = sphi 0, %s27
    %s44 = sphi 0, %s28
    %s50 = sphi 0, %s52
    %s53 = sphi 0, %s50
    %s54 = sphi 0, %s53
    %s70 = sphi 0, %s54
    %s74 = sphi 0, %s74
    %s76 = sphi 0, %s74
    %s77 = sphi 0, %s76
    %s91 = sphi 0, %s77
    %s95 = sphi 0, %s95
    %s97 = sphi 0, %s95
    %s98 = sphi 0, %s97
    %s112 = sphi 0, %s98
    %s116 = sphi 0, %s116
    %s118 = sphi 0, %s116
    %s119 = sphi 0, %s118
    %s133 = sphi 0, %s119
    %s137 = sphi 0, %s137
    %s139 = sphi 0, %s137
    %s140 = sphi 0, %s139
    %s154 = sphi 0, %s140
    %s158 = sphi 0, %s158
    %s160 = sphi 0, %s158
    %s161 = sphi 0, %s160
    %s175 = sphi 0, %s161
    %s179 = sphi 0, %s179
    %s181 = sphi 0, %s179
    %s182 = sphi 0, %s181
    %s196 = sphi 0, %s182
    %s202 = sphi 0, %s204
    %s205 = sphi 0, %s202
    %s206 = sphi 0, %s205
    %s222 = sphi 0, %s206
  $region4: #{draftnet_forward.1} parent=0 // loop_header_branch
    %17 = sbr.rel (%p15) target = $region8
  $region5: #{draftnet_forward.1} parent=0 // loop_body
    %s19 = ssub.s32 %s14, 1
    %s20 = ssub.s32 %s14, 2
    %s21 = sadd.s32 %s14, 1
    %s22 = ssub.s32 %s14, %s21
    %p23 = scmp.eq.s32.totalorder %s22, 0
    %s25 = sadd.s32 %s24, 1
    %s26 = scalar_select %p23, %s24, %s25
    %p29 = pneg %p23
    %p30 = scmp.eq.s32.totalorder %s14, 2
    %p31 = por %p29, %p30
    %p32 = scmp.ne.s32.totalorder %s24, %s27
    %p33 = scmp.eq.s32.totalorder %s14, 0
    %p34 = por %p32, %p33
    %p35 = scmp.ne.s32.totalorder %s24, %s27
    %p36 = scmp.eq.s32.totalorder %s19, 2
    %p37 = por %p35, %p36
    %p38 = scmp.ne.s32.totalorder %s27, %s28
    %p39 = scmp.eq.s32.totalorder %s19, 0
    %p40 = por %p38, %p39
    %p41 = scmp.ne.s32.totalorder %s27, %s28
    %p42 = scmp.eq.s32.totalorder %s20, 2
    %p43 = por %p41, %p42
    %p45 = scmp.ne.s32.totalorder %s28, %s44
    %p46 = scmp.eq.s32.totalorder %s20, 0
    %p47 = por %p45, %p46
    %s48 = ssub.s32 %s14, %s21
    %p49 = scmp.eq.s32.totalorder %s48, 0
    %s51 = sadd.s32 %s50, 1
    %s52 = scalar_select %p49, %s50, %s51
    %p55 = pneg %p49
    %p56 = scmp.eq.s32.totalorder %s14, 2
    %p57 = por %p55, %p56
    %p58 = scmp.ne.s32.totalorder %s50, %s53
    %p59 = scmp.eq.s32.totalorder %s14, 0
    %p60 = por %p58, %p59
    %p61 = scmp.ne.s32.totalorder %s50, %s53
    %p62 = scmp.eq.s32.totalorder %s19, 2
    %p63 = por %p61, %p62
    %p64 = scmp.ne.s32.totalorder %s53, %s54
    %p65 = scmp.eq.s32.totalorder %s19, 0
    %p66 = por %p64, %p65
    %p67 = scmp.ne.s32.totalorder %s53, %s54
    %p68 = scmp.eq.s32.totalorder %s20, 2
    %p69 = por %p67, %p68
    %p71 = scmp.ne.s32.totalorder %s54, %s70
    %p72 = scmp.eq.s32.totalorder %s20, 0
    %p73 = por %p71, %p72
    %s75 = sadd.s32 %s74, 1
    %p78 = scmp.eq.s32.totalorder %s14, 2
    %p79 = scmp.ne.s32.totalorder %s74, %s76
    %p80 = scmp.eq.s32.totalorder %s14, 0
    %p81 = por %p79, %p80
    %p82 = scmp.ne.s32.totalorder %s74, %s76
    %p83 = scmp.eq.s32.totalorder %s19, 2
    %p84 = por %p82, %p83
    %p85 = scmp.ne.s32.totalorder %s76, %s77
    %p86 = scmp.eq.s32.totalorder %s19, 0
    %p87 = por %p85, %p86
    %p88 = scmp.ne.s32.totalorder %s76, %s77
    %p89 = scmp.eq.s32.totalorder %s20, 2
    %p90 = por %p88, %p89
    %p92 = scmp.ne.s32.totalorder %s77, %s91
    %p93 = scmp.eq.s32.totalorder %s20, 0
    %p94 = por %p92, %p93
    %s96 = sadd.s32 %s95, 1
    %p99 = scmp.eq.s32.totalorder %s14, 2
    %p100 = scmp.ne.s32.totalorder %s95, %s97
    %p101 = scmp.eq.s32.totalorder %s14, 0
    %p102 = por %p100, %p101
    %p103 = scmp.ne.s32.totalorder %s95, %s97
    %p104 = scmp.eq.s32.totalorder %s19, 2
    %p105 = por %p103, %p104
    %p106 = scmp.ne.s32.totalorder %s97, %s98
    %p107 = scmp.eq.s32.totalorder %s19, 0
    %p108 = por %p106, %p107
    %p109 = scmp.ne.s32.totalorder %s97, %s98
    %p110 = scmp.eq.s32.totalorder %s20, 2
    %p111 = por %p109, %p110
    %p113 = scmp.ne.s32.totalorder %s98, %s112
    %p114 = scmp.eq.s32.totalorder %s20, 0
    %p115 = por %p113, %p114
    %s117 = sadd.s32 %s116, 1
    %p120 = scmp.eq.s32.totalorder %s14, 2
    %p121 = scmp.ne.s32.totalorder %s116, %s118
    %p122 = scmp.eq.s32.totalorder %s14, 0
    %p123 = por %p121, %p122
    %p124 = scmp.ne.s32.totalorder %s116, %s118
    %p125 = scmp.eq.s32.totalorder %s19, 2
    %p126 = por %p124, %p125
    %p127 = scmp.ne.s32.totalorder %s118, %s119
    %p128 = scmp.eq.s32.totalorder %s19, 0
    %p129 = por %p127, %p128
    %p130 = scmp.ne.s32.totalorder %s118, %s119
    %p131 = scmp.eq.s32.totalorder %s20, 2
    %p132 = por %p130, %p131
    %p134 = scmp.ne.s32.totalorder %s119, %s133
    %p135 = scmp.eq.s32.totalorder %s20, 0
    %p136 = por %p134, %p135
    %s138 = sadd.s32 %s137, 1
    %p141 = scmp.eq.s32.totalorder %s14, 2
    %p142 = scmp.ne.s32.totalorder %s137, %s139
    %p143 = scmp.eq.s32.totalorder %s14, 0
    %p144 = por %p142, %p143
    %p145 = scmp.ne.s32.totalorder %s137, %s139
    %p146 = scmp.eq.s32.totalorder %s19, 2
    %p147 = por %p145, %p146
    %p148 = scmp.ne.s32.totalorder %s139, %s140
    %p149 = scmp.eq.s32.totalorder %s19, 0
    %p150 = por %p148, %p149
    %p151 = scmp.ne.s32.totalorder %s139, %s140
    %p152 = scmp.eq.s32.totalorder %s20, 2
    %p153 = por %p151, %p152
    %p155 = scmp.ne.s32.totalorder %s140, %s154
    %p156 = scmp.eq.s32.totalorder %s20, 0
    %p157 = por %p155, %p156
    %s159 = sadd.s32 %s158, 1
    %p162 = scmp.eq.s32.totalorder %s14, 2
    %p163 = scmp.ne.s32.totalorder %s158, %s160
    %p164 = scmp.eq.s32.totalorder %s14, 0
    %p165 = por %p163, %p164
    %p166 = scmp.ne.s32.totalorder %s158, %s160
    %p167 = scmp.eq.s32.totalorder %s19, 2
    %p168 = por %p166, %p167
    %p169 = scmp.ne.s32.totalorder %s160, %s161
    %p170 = scmp.eq.s32.totalorder %s19, 0
    %p171 = por %p169, %p170
    %p172 = scmp.ne.s32.totalorder %s160, %s161
    %p173 = scmp.eq.s32.totalorder %s20, 2
    %p174 = por %p172, %p173
    %p176 = scmp.ne.s32.totalorder %s161, %s175
    %p177 = scmp.eq.s32.totalorder %s20, 0
    %p178 = por %p176, %p177
    %s180 = sadd.s32 %s179, 1
    %p183 = scmp.eq.s32.totalorder %s14, 2
    %p184 = scmp.ne.s32.totalorder %s179, %s181
    %p185 = scmp.eq.s32.totalorder %s14, 0
    %p186 = por %p184, %p185
    %p187 = scmp.ne.s32.totalorder %s179, %s181
    %p188 = scmp.eq.s32.totalorder %s19, 2
    %p189 = por %p187, %p188
    %p190 = scmp.ne.s32.totalorder %s181, %s182
    %p191 = scmp.eq.s32.totalorder %s19, 0
    %p192 = por %p190, %p191
    %p193 = scmp.ne.s32.totalorder %s181, %s182
    %p194 = scmp.eq.s32.totalorder %s20, 2
    %p195 = por %p193, %p194
    %p197 = scmp.ne.s32.totalorder %s182, %s196
    %p198 = scmp.eq.s32.totalorder %s20, 0
    %p199 = por %p197, %p198
    %s200 = ssub.s32 %s14, %s21
    %p201 = scmp.eq.s32.totalorder %s200, 0
    %s203 = sadd.s32 %s202, 1
    %s204 = scalar_select %p201, %s202, %s203
    %p207 = pneg %p201
    %p208 = scmp.eq.s32.totalorder %s14, 2
    %p209 = por %p207, %p208
    %p210 = scmp.ne.s32.totalorder %s202, %s205
    %p211 = scmp.eq.s32.totalorder %s14, 0
    %p212 = por %p210, %p211
    %p213 = scmp.ne.s32.totalorder %s202, %s205
    %p214 = scmp.eq.s32.totalorder %s19, 2
    %p215 = por %p213, %p214
    %p216 = scmp.ne.s32.totalorder %s205, %s206
    %p217 = scmp.eq.s32.totalorder %s19, 0
    %p218 = por %p216, %p217
    %p219 = scmp.ne.s32.totalorder %s205, %s206
    %p220 = scmp.eq.s32.totalorder %s20, 2
    %p221 = por %p219, %p220
    %p223 = scmp.ne.s32.totalorder %s206, %s222
    %p224 = scmp.eq.s32.totalorder %s20, 0
    %p225 = por %p223, %p224
    %p226 = scmp.le.s32.totalorder 1, %s14
    %p227 = scmp.lt.s32.totalorder %s14, 4
    %p228 = pnand %p226, %p227
    %p229 = pneg %p228
    // Predicated region
    $region9: #{draftnet_forward.1} parent=5 // pred_check
      _
    $region10: #{draftnet_forward.1} parent=5 // pred_check_branch
      %231 = sbr.rel (%p228) target = $region12
    $region11: #{draftnet_forward.1} parent=5 // pred_region
      %s232 = ssub.s32 %s14, 1
      // Predicated region
      $region13: #{draftnet_forward.1} parent=11 // pred_check
        %p233 = pneg %p87
      $region14: #{draftnet_forward.1} parent=11 // pred_check_branch
        %235 = sbr.rel (%p233) target = $region16
      $region15: #{draftnet_forward.1} parent=11 // pred_region
        _
      $region16: #{draftnet_forward.1} parent=11 // pred_fallthru
        _
      // Predicated region
      $region17: #{draftnet_forward.1} parent=11 // pred_check
        %p236 = pneg %p108
      $region18: #{draftnet_forward.1} parent=11 // pred_check_branch
        %238 = sbr.rel (%p236) target = $region20
      $region19: #{draftnet_forward.1} parent=11 // pred_region
        _
      $region20: #{draftnet_forward.1} parent=11 // pred_fallthru
        _
      // Predicated region
      $region21: #{draftnet_forward.1} parent=11 // pred_check
        %p239 = pneg %p129
      $region22: #{draftnet_forward.1} parent=11 // pred_check_branch
        %241 = sbr.rel (%p239) target = $region24
      $region23: #{draftnet_forward.1} parent=11 // pred_region
        _
      $region24: #{draftnet_forward.1} parent=11 // pred_fallthru
        _
      // Predicated region
      $region25: #{draftnet_forward.1} parent=11 // pred_check
        %p242 = pneg %p150
      $region26: #{draftnet_forward.1} parent=11 // pred_check_branch
        %244 = sbr.rel (%p242) target = $region28
      $region27: #{draftnet_forward.1} parent=11 // pred_region
        _
      $region28: #{draftnet_forward.1} parent=11 // pred_fallthru
        _
      // Predicated region
      $region29: #{draftnet_forward.1} parent=11 // pred_check
        %p245 = pneg %p171
      $region30: #{draftnet_forward.1} parent=11 // pred_check_branch
        %247 = sbr.rel (%p245) target = $region32
      $region31: #{draftnet_forward.1} parent=11 // pred_region
        _
      $region32: #{draftnet_forward.1} parent=11 // pred_fallthru
        _
      // Predicated region
      $region33: #{draftnet_forward.1} parent=11 // pred_check
        %p248 = pneg %p192
      $region34: #{draftnet_forward.1} parent=11 // pred_check_branch
        %250 = sbr.rel (%p248) target = $region36
      $region35: #{draftnet_forward.1} parent=11 // pred_region
        _
      $region36: #{draftnet_forward.1} parent=11 // pred_fallthru
        _
    $region12: #{draftnet_forward.1} parent=5 // pred_fallthru
      _
    %p251 = scmp.lt.s32.totalorder %s14, 3
    // Predicated region
    $region37: #{draftnet_forward.1} parent=5 // pred_check
      %p252 = pneg %p251
    $region38: #{draftnet_forward.1} parent=5 // pred_check_branch
      %254 = sbr.rel (%p252) target = $region40
    $region39: #{draftnet_forward.1} parent=5 // pred_region
      // Predicated region
      $region41: #{draftnet_forward.1} parent=39 // pred_check
        %p255 = pneg %p34
      $region42: #{draftnet_forward.1} parent=39 // pred_check_branch
        %257 = sbr.rel (%p255) target = $region44
      $region43: #{draftnet_forward.1} parent=39 // pred_region
        %s258 = smul.u32 2, %s14
        %p259 = scmp.lt.s32.totalorder %s258, 5
        %s260 = scalar_select %p259, %s258, 5
        %s261 = smul.addr %s260, 3
        %s262 = smul.addr %s261, 4
        %s263 = scalar_lea.vmem %s0, %s262
        %s264 = smul.u32 2, %s14
      $region44: #{draftnet_forward.1} parent=39 // pred_fallthru
        _
      // Predicated region
      $region45: #{draftnet_forward.1} parent=39 // pred_check
        %p265 = pneg %p60
      $region46: #{draftnet_forward.1} parent=39 // pred_check_branch
        %267 = sbr.rel (%p265) target = $region48
      $region47: #{draftnet_forward.1} parent=39 // pred_region
        %s268 = smul.u32 2, %s14
        %p269 = scmp.lt.s32.totalorder %s268, 5
        %s270 = scalar_select %p269, %s268, 5
        %s271 = smul.addr %s270, 3
        %s272 = smul.addr %s271, 8
        %s273 = scalar_lea.vmem %s1, %s272
        %s274 = smul.u32 2, %s14
      $region48: #{draftnet_forward.1} parent=39 // pred_fallthru
        _
    $region40: #{draftnet_forward.1} parent=5 // pred_fallthru
      _
    %p275 = scmp.le.s32.totalorder 1, %s14
    %p276 = scmp.lt.s32.totalorder %s14, 4
    %p277 = pnand %p275, %p276
    %p278 = pneg %p277
    // Predicated region
    $region49: #{draftnet_forward.1} parent=5 // pred_check
      _
    $region50: #{draftnet_forward.1} parent=5 // pred_check_branch
      %280 = sbr.rel (%p277) target = $region52
    $region51: #{draftnet_forward.1} parent=5 // pred_region
      %s281 = ssub.s32 %s14, 1
      %s282 = smul.u32 2, %s19
      %p283 = scmp.lt.s32.totalorder %s282, 5
      %s284 = scalar_select %p283, %s282, 5
      %s285 = smul.addr %s284, 3
      %s286 = smul.addr %s285, 4
      %s287 = scalar_lea.vmem %s0, %s286
      %p288 = pneg %p40
      %p289 = pneg %p37
      %s290 = smul.u32 2, %s19
      %p291 = scmp.lt.s32.totalorder %s290, 5
      %s292 = scalar_select %p291, %s290, 5
      %s293 = smul.addr %s292, 3
      %s294 = smul.addr %s293, 8
      %s295 = scalar_lea.vmem %s1, %s294
      %p296 = pneg %p66
      %p297 = pneg %p63
      %p298 = pneg %p87
      %p299 = pneg %p84
      %p300 = pneg %p108
      %p301 = pneg %p105
      %p302 = pneg %p129
      %p303 = pneg %p126
      %p304 = pneg %p150
      %p305 = pneg %p147
      %p306 = pneg %p171
      %p307 = pneg %p168
      %p308 = pneg %p192
      %p309 = pneg %p189
      %p310 = pneg %p218
      %p311 = pneg %p215
      %s312 = smul.u32 2, %s19
      %p313 = scmp.lt.s32.totalorder %s312, 5
      %s314 = scalar_select %p313, %s312, 5
      %s315 = smul.addr %s314, 3
      %s316 = smul.addr %s315, 8
      %s317 = scalar_lea.vmem %s8, %s316
      %s318 = smul.u32 2, %s19
      %p319 = scmp.lt.s32.totalorder %s318, 5
      %s320 = scalar_select %p319, %s318, 5
      %s321 = smul.addr %s320, 3
      %s322 = smul.addr %s321, 4
      %s323 = scalar_lea.vmem %s0, %s322
      %s324 = smul.u32 2, %s19
      %s325 = smul.u32 2, %s19
      %p326 = scmp.lt.s32.totalorder %s325, 5
      %s327 = scalar_select %p326, %s325, 5
      %s328 = smul.addr %s327, 3
      %s329 = smul.addr %s328, 8
      %s330 = scalar_lea.vmem %s1, %s329
      %s331 = smul.u32 2, %s19
      %s332 = smul.u32 2, %s19
      %p333 = scmp.lt.s32.totalorder %s332, 5
      %s334 = scalar_select %p333, %s332, 5
      %s335 = smul.addr %s334, 3
      %s336 = smul.addr %s335, 8
      %s337 = scalar_lea.vmem %s8, %s336
      %s338 = smul.u32 2, %s19
      %v340 = vld [vmem:[%s323] sm:$0xff]
      %v341 = vld [vmem:[%s323 + $0x8] sm:$0xf]
      %v342 = vld [vmem:[%s323 + $0xc] sm:$0xff]
      %v343 = vld [vmem:[%s323 + $0x14] sm:$0xf]
      %v344 = vld [vmem:[%s2] sm:$0xff]
      %v345 = vld [vmem:[%s2 + $0x8] sm:$0xff]
      %v346 = vld [vmem:[%s2 + $0x10] sm:$0xff]
      %v347 = vld [vmem:[%s2 + $0x18] sm:$0xff]
      %v348 = vld [vmem:[%s2 + $0x20] sm:$0xff]
      %v349 = vld [vmem:[%s2 + $0x28] sm:$0xff]
      %v350 = vld [vmem:[%s2 + $0x30] sm:$0xff]
      %v351 = vld [vmem:[%s2 + $0x38] sm:$0xff]
      %v352 = vld [vmem:[%s2 + $0x40] sm:$0xff]
      %v353 = vld [vmem:[%s2 + $0x48] sm:$0xff]
      %v354 = vld [vmem:[%s2 + $0x50] sm:$0xff]
      %v355 = vld [vmem:[%s2 + $0x58] sm:$0xff]
      %v356 = vld [vmem:[%s2 + $0x60] sm:$0xff]
      %v357 = vld [vmem:[%s2 + $0x68] sm:$0xff]
      %v358 = vld [vmem:[%s2 + $0x70] sm:$0xff]
      %v359 = vld [vmem:[%s2 + $0x78] sm:$0xff]
      %v360 = vld [vmem:[%s2 + $0x80] sm:$0xff]
      %v361 = vld [vmem:[%s2 + $0x88] sm:$0xff]
      %v362 = vld [vmem:[%s2 + $0x90] sm:$0xff]
      %v363 = vld [vmem:[%s2 + $0x98] sm:$0xff]
      %v364 = vld [vmem:[%s2 + $0xa0] sm:$0xff]
      %v365 = vld [vmem:[%s2 + $0xa8] sm:$0xff]
      %v366 = vld [vmem:[%s2 + $0xb0] sm:$0xff]
      %v367 = vld [vmem:[%s2 + $0xb8] sm:$0xff]
      %v368 = vld [vmem:[%s2 + $0xc0] sm:$0xff]
      %v369 = vld [vmem:[%s2 + $0xc8] sm:$0xff]
      %v370 = vld [vmem:[%s2 + $0xd0] sm:$0xff]
      %v371 = vld [vmem:[%s2 + $0xd8] sm:$0xff]
      %v372 = vld [vmem:[%s2 + $0xe0] sm:$0xff]
      %v373 = vld [vmem:[%s2 + $0xe8] sm:$0xff]
      %v374 = vld [vmem:[%s2 + $0xf0] sm:$0xff]
      %v375 = vld [vmem:[%s2 + $0xf8] sm:$0xff]
      %v376 = vld [vmem:[%s2 + $0x100] sm:$0xff]
      %v377 = vld [vmem:[%s2 + $0x108] sm:$0xff]
      %v378 = vld [vmem:[%s2 + $0x110] sm:$0xff]
      %v379 = vld [vmem:[%s2 + $0x118] sm:$0xff]
      %v380 = vld [vmem:[%s2 + $0x120] sm:$0xff]
      %v381 = vld [vmem:[%s2 + $0x128] sm:$0xff]
      %v382 = vld [vmem:[%s2 + $0x130] sm:$0xff]
      %v383 = vld [vmem:[%s2 + $0x138] sm:$0xff]
      %v384 = vld [vmem:[%s2 + $0x140] sm:$0xff]
      %v385 = vld [vmem:[%s2 + $0x148] sm:$0xff]
      %v386 = vld [vmem:[%s2 + $0x150] sm:$0xff]
      %v387 = vld [vmem:[%s2 + $0x158] sm:$0xff]
      %v388 = vld [vmem:[%s2 + $0x160] sm:$0xff]
      %v389 = vld [vmem:[%s2 + $0x168] sm:$0xff]
      %v390 = vld [vmem:[%s2 + $0x170] sm:$0xff]
      %v391 = vld [vmem:[%s2 + $0x178] sm:$0xff]
      %v392 = vld [vmem:[%s2 + $0x180] sm:$0xff]
      %v393 = vld [vmem:[%s2 + $0x188] sm:$0xff]
      %v394 = vld [vmem:[%s2 + $0x190] sm:$0xff]
      %v395 = vld [vmem:[%s2 + $0x198] sm:$0xff]
      %v396 = vld [vmem:[%s2 + $0x1a0] sm:$0xff]
      %v397 = vld [vmem:[%s2 + $0x1a8] sm:$0xff]
      %v398 = vld [vmem:[%s2 + $0x1b0] sm:$0xff]
      %v399 = vld [vmem:[%s2 + $0x1b8] sm:$0xff]
      %v400 = vld [vmem:[%s2 + $0x1c0] sm:$0xff]
      %v401 = vld [vmem:[%s2 + $0x1c8] sm:$0xff]
      %v402 = vld [vmem:[%s2 + $0x1d0] sm:$0xff]
      %v403 = vld [vmem:[%s2 + $0x1d8] sm:$0xff]
      %v404 = vld [vmem:[%s2 + $0x1e0] sm:$0xff]
      %v405 = vld [vmem:[%s2 + $0x1e8] sm:$0xff]
      %v406 = vld [vmem:[%s2 + $0x1f0] sm:$0xff]
      %v407 = vld [vmem:[%s2 + $0x1f8] sm:$0xff]
      %v408 = vld [vmem:[%s2 + $0x200] sm:$0xff]
      %v409 = vld [vmem:[%s2 + $0x208] sm:$0xff]
      %v410 = vld [vmem:[%s2 + $0x210] sm:$0xff]
      %v411 = vld [vmem:[%s2 + $0x218] sm:$0xff]
      %v412 = vld [vmem:[%s2 + $0x220] sm:$0xff]
      %v413 = vld [vmem:[%s2 + $0x228] sm:$0xff]
      %v414 = vld [vmem:[%s2 + $0x230] sm:$0xff]
      %v415 = vld [vmem:[%s2 + $0x238] sm:$0xff]
      %v416 = vld [vmem:[%s2 + $0x240] sm:$0xff]
      %v417 = vld [vmem:[%s2 + $0x248] sm:$0xff]
      %v418 = vld [vmem:[%s2 + $0x250] sm:$0xff]
      %v419 = vld [vmem:[%s2 + $0x258] sm:$0xff]
      %v420 = vld [vmem:[%s2 + $0x260] sm:$0xff]
      %v421 = vld [vmem:[%s2 + $0x268] sm:$0xff]
      %v422 = vld [vmem:[%s2 + $0x270] sm:$0xff]
      %v423 = vld [vmem:[%s2 + $0x278] sm:$0xff]
      %v424 = vld [vmem:[%s2 + $0x280] sm:$0xff]
      %v425 = vld [vmem:[%s2 + $0x288] sm:$0xff]
      %v426 = vld [vmem:[%s2 + $0x290] sm:$0xff]
      %v427 = vld [vmem:[%s2 + $0x298] sm:$0xff]
      %v428 = vld [vmem:[%s2 + $0x2a0] sm:$0xff]
      %v429 = vld [vmem:[%s2 + $0x2a8] sm:$0xff]
      %v430 = vld [vmem:[%s2 + $0x2b0] sm:$0xff]
      %v431 = vld [vmem:[%s2 + $0x2b8] sm:$0xff]
      %v432 = vld [vmem:[%s2 + $0x2c0] sm:$0xff]
      %v433 = vld [vmem:[%s2 + $0x2c8] sm:$0xff]
      %v434 = vld [vmem:[%s2 + $0x2d0] sm:$0xff]
      %v435 = vld [vmem:[%s2 + $0x2d8] sm:$0xff]
      %v436 = vld [vmem:[%s2 + $0x2e0] sm:$0xff]
      %v437 = vld [vmem:[%s2 + $0x2e8] sm:$0xff]
      %v438 = vld [vmem:[%s2 + $0x2f0] sm:$0xff]
      %v439 = vld [vmem:[%s2 + $0x2f8] sm:$0xff]
      %v440 = vld [vmem:[%s3] sm:$0xf]
      %v442 = vlaneseq
      %v443 = vshrl.u32 %v442, 7
      %v444 = vsub.s32 0, %v443
      %v445 = vrot.slane %v440, %v444
      %v446 = vlaneseq
      %v447 = vshrl.u32 %v446, 7
      %v448 = vsub.s32 1, %v447
      %v449 = vrot.slane %v440, %v448
      %v450 = vlaneseq
      %v451 = vshrl.u32 %v450, 7
      %v452 = vsub.s32 2, %v451
      %v453 = vrot.slane %v440, %v452
      %v454 = vlaneseq
      %v455 = vshrl.u32 %v454, 7
      %v456 = vsub.s32 3, %v455
      %v457 = vrot.slane %v440, %v456
      %v466 = vunpack.c.l.b16 %v340
      %v467 = vunpack.c.h.b16 %v340
      %v468 = vunpack.c.l.b16 %v341
      %v469 = vunpack.c.l.b16 %v342
      %v470 = vunpack.c.h.b16 %v342
      %v471 = vunpack.c.l.b16 %v343
      %v472 = vpack.c.b16 %v469, %v466
      %v473 = vpack.c.b16 %v470, %v467
      %v474 = vpack.c.b16 %v471, %v468
      %v574 = vunpack.c.l.b16 %v344
      %v575 = vunpack.c.h.b16 %v344
      %v576 = vunpack.c.l.b16 %v345
      %v577 = vunpack.c.h.b16 %v345
      %v578 = vunpack.c.l.b16 %v346
      %v579 = vunpack.c.h.b16 %v346
      %v580 = vunpack.c.l.b16 %v347
      %v581 = vunpack.c.h.b16 %v347
      %v582 = vunpack.c.l.b16 %v348
      %v583 = vunpack.c.h.b16 %v348
      %v584 = vunpack.c.l.b16 %v349
      %v585 = vunpack.c.h.b16 %v349
      %v586 = vunpack.c.l.b16 %v350
      %v587 = vunpack.c.h.b16 %v350
      %v588 = vunpack.c.l.b16 %v351
      %v589 = vunpack.c.h.b16 %v351
      %v590 = vunpack.c.l.b16 %v352
      %v591 = vunpack.c.h.b16 %v352
      %v592 = vunpack.c.l.b16 %v353
      %v593 = vunpack.c.h.b16 %v353
      %v594 = vunpack.c.l.b16 %v354
      %v595 = vunpack.c.h.b16 %v354
      %v596 = vunpack.c.l.b16 %v355
      %v597 = vunpack.c.h.b16 %v355
      %v598 = vunpack.c.l.b16 %v356
      %v599 = vunpack.c.h.b16 %v356
      %v600 = vunpack.c.l.b16 %v357
      %v601 = vunpack.c.h.b16 %v357
      %v602 = vunpack.c.l.b16 %v358
      %v603 = vunpack.c.h.b16 %v358
      %v604 = vunpack.c.l.b16 %v359
      %v605 = vunpack.c.h.b16 %v359
      %v606 = vunpack.c.l.b16 %v360
      %v607 = vunpack.c.h.b16 %v360
      %v608 = vunpack.c.l.b16 %v361
      %v609 = vunpack.c.h.b16 %v361
      %v610 = vunpack.c.l.b16 %v362
      %v611 = vunpack.c.h.b16 %v362
      %v612 = vunpack.c.l.b16 %v363
      %v613 = vunpack.c.h.b16 %v363
      %v614 = vunpack.c.l.b16 %v364
      %v615 = vunpack.c.h.b16 %v364
      %v616 = vunpack.c.l.b16 %v365
      %v617 = vunpack.c.h.b16 %v365
      %v618 = vunpack.c.l.b16 %v366
      %v619 = vunpack.c.h.b16 %v366
      %v620 = vunpack.c.l.b16 %v367
      %v621 = vunpack.c.h.b16 %v367
      %v622 = vunpack.c.l.b16 %v368
      %v623 = vunpack.c.h.b16 %v368
      %v624 = vunpack.c.l.b16 %v369
      %v625 = vunpack.c.h.b16 %v369
      %v626 = vunpack.c.l.b16 %v370
      %v627 = vunpack.c.h.b16 %v370
      %v628 = vunpack.c.l.b16 %v371
      %v629 = vunpack.c.h.b16 %v371
      %v630 = vunpack.c.l.b16 %v372
      %v631 = vunpack.c.h.b16 %v372
      %v632 = vunpack.c.l.b16 %v373
      %v633 = vunpack.c.h.b16 %v373
      %v634 = vunpack.c.l.b16 %v374
      %v635 = vunpack.c.h.b16 %v374
      %v636 = vunpack.c.l.b16 %v375
      %v637 = vunpack.c.h.b16 %v375
      %v638 = vunpack.c.l.b16 %v376
      %v639 = vunpack.c.h.b16 %v376
      %v640 = vunpack.c.l.b16 %v377
      %v641 = vunpack.c.h.b16 %v377
      %v642 = vunpack.c.l.b16 %v378
      %v643 = vunpack.c.h.b16 %v378
      %v644 = vunpack.c.l.b16 %v379
      %v645 = vunpack.c.h.b16 %v379
      %v646 = vunpack.c.l.b16 %v380
      %v647 = vunpack.c.h.b16 %v380
      %v648 = vunpack.c.l.b16 %v381
      %v649 = vunpack.c.h.b16 %v381
      %v650 = vunpack.c.l.b16 %v382
      %v651 = vunpack.c.h.b16 %v382
      %v652 = vunpack.c.l.b16 %v383
      %v653 = vunpack.c.h.b16 %v383
      %v654 = vunpack.c.l.b16 %v384
      %v655 = vunpack.c.h.b16 %v384
      %v656 = vunpack.c.l.b16 %v385
      %v657 = vunpack.c.h.b16 %v385
      %v658 = vunpack.c.l.b16 %v386
      %v659 = vunpack.c.h.b16 %v386
      %v660 = vunpack.c.l.b16 %v387
      %v661 = vunpack.c.h.b16 %v387
      %v662 = vunpack.c.l.b16 %v388
      %v663 = vunpack.c.h.b16 %v388
      %v664 = vunpack.c.l.b16 %v389
      %v665 = vunpack.c.h.b16 %v389
      %v666 = vunpack.c.l.b16 %v390
      %v667 = vunpack.c.h.b16 %v390
      %v668 = vunpack.c.l.b16 %v391
      %v669 = vunpack.c.h.b16 %v391
      %v670 = vunpack.c.l.b16 %v392
      %v671 = vunpack.c.h.b16 %v392
      %v672 = vunpack.c.l.b16 %v393
      %v673 = vunpack.c.h.b16 %v393
      %v674 = vunpack.c.l.b16 %v394
      %v675 = vunpack.c.h.b16 %v394
      %v676 = vunpack.c.l.b16 %v395
      %v677 = vunpack.c.h.b16 %v395
      %v678 = vunpack.c.l.b16 %v396
      %v679 = vunpack.c.h.b16 %v396
      %v680 = vunpack.c.l.b16 %v397
      %v681 = vunpack.c.h.b16 %v397
      %v682 = vunpack.c.l.b16 %v398
      %v683 = vunpack.c.h.b16 %v398
      %v684 = vunpack.c.l.b16 %v399
      %v685 = vunpack.c.h.b16 %v399
      %v686 = vunpack.c.l.b16 %v400
      %v687 = vunpack.c.h.b16 %v400
      %v688 = vunpack.c.l.b16 %v401
      %v689 = vunpack.c.h.b16 %v401
      %v690 = vunpack.c.l.b16 %v402
      %v691 = vunpack.c.h.b16 %v402
      %v692 = vunpack.c.l.b16 %v403
      %v693 = vunpack.c.h.b16 %v403
      %v694 = vunpack.c.l.b16 %v404
      %v695 = vunpack.c.h.b16 %v404
      %v696 = vunpack.c.l.b16 %v405
      %v697 = vunpack.c.h.b16 %v405
      %v698 = vunpack.c.l.b16 %v406
      %v699 = vunpack.c.h.b16 %v406
      %v700 = vunpack.c.l.b16 %v407
      %v701 = vunpack.c.h.b16 %v407
      %v702 = vunpack.c.l.b16 %v408
      %v703 = vunpack.c.h.b16 %v408
      %v704 = vunpack.c.l.b16 %v409
      %v705 = vunpack.c.h.b16 %v409
      %v706 = vunpack.c.l.b16 %v410
      %v707 = vunpack.c.h.b16 %v410
      %v708 = vunpack.c.l.b16 %v411
      %v709 = vunpack.c.h.b16 %v411
      %v710 = vunpack.c.l.b16 %v412
      %v711 = vunpack.c.h.b16 %v412
      %v712 = vunpack.c.l.b16 %v413
      %v713 = vunpack.c.h.b16 %v413
      %v714 = vunpack.c.l.b16 %v414
      %v715 = vunpack.c.h.b16 %v414
      %v716 = vunpack.c.l.b16 %v415
      %v717 = vunpack.c.h.b16 %v415
      %v718 = vunpack.c.l.b16 %v416
      %v719 = vunpack.c.h.b16 %v416
      %v720 = vunpack.c.l.b16 %v417
      %v721 = vunpack.c.h.b16 %v417
      %v722 = vunpack.c.l.b16 %v418
      %v723 = vunpack.c.h.b16 %v418
      %v724 = vunpack.c.l.b16 %v419
      %v725 = vunpack.c.h.b16 %v419
      %v726 = vunpack.c.l.b16 %v420
      %v727 = vunpack.c.h.b16 %v420
      %v728 = vunpack.c.l.b16 %v421
      %v729 = vunpack.c.h.b16 %v421
      %v730 = vunpack.c.l.b16 %v422
      %v731 = vunpack.c.h.b16 %v422
      %v732 = vunpack.c.l.b16 %v423
      %v733 = vunpack.c.h.b16 %v423
      %v734 = vunpack.c.l.b16 %v424
      %v735 = vunpack.c.h.b16 %v424
      %v736 = vunpack.c.l.b16 %v425
      %v737 = vunpack.c.h.b16 %v425
      %v738 = vunpack.c.l.b16 %v426
      %v739 = vunpack.c.h.b16 %v426
      %v740 = vunpack.c.l.b16 %v427
      %v741 = vunpack.c.h.b16 %v427
      %v742 = vunpack.c.l.b16 %v428
      %v743 = vunpack.c.h.b16 %v428
      %v744 = vunpack.c.l.b16 %v429
      %v745 = vunpack.c.h.b16 %v429
      %v746 = vunpack.c.l.b16 %v430
      %v747 = vunpack.c.h.b16 %v430
      %v748 = vunpack.c.l.b16 %v431
      %v749 = vunpack.c.h.b16 %v431
      %v750 = vunpack.c.l.b16 %v432
      %v751 = vunpack.c.h.b16 %v432
      %v752 = vunpack.c.l.b16 %v433
      %v753 = vunpack.c.h.b16 %v433
      %v754 = vunpack.c.l.b16 %v434
      %v755 = vunpack.c.h.b16 %v434
      %v756 = vunpack.c.l.b16 %v435
      %v757 = vunpack.c.h.b16 %v435
      %v758 = vunpack.c.l.b16 %v436
      %v759 = vunpack.c.h.b16 %v436
      %v760 = vunpack.c.l.b16 %v437
      %v761 = vunpack.c.h.b16 %v437
      %v762 = vunpack.c.l.b16 %v438
      %v763 = vunpack.c.h.b16 %v438
      %v764 = vunpack.c.l.b16 %v439
      %v765 = vunpack.c.h.b16 %v439
      %v766 = vpack.c.b16 %v578, %v574
      %v767 = vpack.c.b16 %v579, %v575
      %v768 = vpack.c.b16 %v580, %v576
      %v769 = vpack.c.b16 %v581, %v577
      %v770 = vpack.c.b16 %v586, %v582
      %v771 = vpack.c.b16 %v587, %v583
      %v772 = vpack.c.b16 %v588, %v584
      %v773 = vpack.c.b16 %v589, %v585
      %v774 = vpack.c.b16 %v594, %v590
      %v775 = vpack.c.b16 %v595, %v591
      %v776 = vpack.c.b16 %v596, %v592
      %v777 = vpack.c.b16 %v597, %v593
      %v778 = vpack.c.b16 %v602, %v598
      %v779 = vpack.c.b16 %v603, %v599
      %v780 = vpack.c.b16 %v604, %v600
      %v781 = vpack.c.b16 %v605, %v601
      %v782 = vpack.c.b16 %v610, %v606
      %v783 = vpack.c.b16 %v611, %v607
      %v784 = vpack.c.b16 %v612, %v608
      %v785 = vpack.c.b16 %v613, %v609
      %v786 = vpack.c.b16 %v618, %v614
      %v787 = vpack.c.b16 %v619, %v615
      %v788 = vpack.c.b16 %v620, %v616
      %v789 = vpack.c.b16 %v621, %v617
      %v790 = vpack.c.b16 %v626, %v622
      %v791 = vpack.c.b16 %v627, %v623
      %v792 = vpack.c.b16 %v628, %v624
      %v793 = vpack.c.b16 %v629, %v625
      %v794 = vpack.c.b16 %v634, %v630
      %v795 = vpack.c.b16 %v635, %v631
      %v796 = vpack.c.b16 %v636, %v632
      %v797 = vpack.c.b16 %v637, %v633
      %v798 = vpack.c.b16 %v642, %v638
      %v799 = vpack.c.b16 %v643, %v639
      %v800 = vpack.c.b16 %v644, %v640
      %v801 = vpack.c.b16 %v645, %v641
      %v802 = vpack.c.b16 %v650, %v646
      %v803 = vpack.c.b16 %v651, %v647
      %v804 = vpack.c.b16 %v652, %v648
      %v805 = vpack.c.b16 %v653, %v649
      %v806 = vpack.c.b16 %v658, %v654
      %v807 = vpack.c.b16 %v659, %v655
      %v808 = vpack.c.b16 %v660, %v656
      %v809 = vpack.c.b16 %v661, %v657
      %v810 = vpack.c.b16 %v666, %v662
      %v811 = vpack.c.b16 %v667, %v663
      %v812 = vpack.c.b16 %v668, %v664
      %v813 = vpack.c.b16 %v669, %v665
      %v814 = vpack.c.b16 %v674, %v670
      %v815 = vpack.c.b16 %v675, %v671
      %v816 = vpack.c.b16 %v676, %v672
      %v817 = vpack.c.b16 %v677, %v673
      %v818 = vpack.c.b16 %v682, %v678
      %v819 = vpack.c.b16 %v683, %v679
      %v820 = vpack.c.b16 %v684, %v680
      %v821 = vpack.c.b16 %v685, %v681
      %v822 = vpack.c.b16 %v690, %v686
      %v823 = vpack.c.b16 %v691, %v687
      %v824 = vpack.c.b16 %v692, %v688
      %v825 = vpack.c.b16 %v693, %v689
      %v826 = vpack.c.b16 %v698, %v694
      %v827 = vpack.c.b16 %v699, %v695
      %v828 = vpack.c.b16 %v700, %v696
      %v829 = vpack.c.b16 %v701, %v697
      %v830 = vpack.c.b16 %v706, %v702
      %v831 = vpack.c.b16 %v707, %v703
      %v832 = vpack.c.b16 %v708, %v704
      %v833 = vpack.c.b16 %v709, %v705
      %v834 = vpack.c.b16 %v714, %v710
      %v835 = vpack.c.b16 %v715, %v711
      %v836 = vpack.c.b16 %v716, %v712
      %v837 = vpack.c.b16 %v717, %v713
      %v838 = vpack.c.b16 %v722, %v718
      %v839 = vpack.c.b16 %v723, %v719
      %v840 = vpack.c.b16 %v724, %v720
      %v841 = vpack.c.b16 %v725, %v721
      %v842 = vpack.c.b16 %v730, %v726
      %v843 = vpack.c.b16 %v731, %v727
      %v844 = vpack.c.b16 %v732, %v728
      %v845 = vpack.c.b16 %v733, %v729
      %v846 = vpack.c.b16 %v738, %v734
      %v847 = vpack.c.b16 %v739, %v735
      %v848 = vpack.c.b16 %v740, %v736
      %v849 = vpack.c.b16 %v741, %v737
      %v850 = vpack.c.b16 %v746, %v742
      %v851 = vpack.c.b16 %v747, %v743
      %v852 = vpack.c.b16 %v748, %v744
      %v853 = vpack.c.b16 %v749, %v745
      %v854 = vpack.c.b16 %v754, %v750
      %v855 = vpack.c.b16 %v755, %v751
      %v856 = vpack.c.b16 %v756, %v752
      %v857 = vpack.c.b16 %v757, %v753
      %v858 = vpack.c.b16 %v762, %v758
      %v859 = vpack.c.b16 %v763, %v759
      %v860 = vpack.c.b16 %v764, %v760
      %v861 = vpack.c.b16 %v765, %v761
      %958 = vmatprep.subr.bf16.mxu0 %v767
      %959 = vmatpush1.bf16.msra.mxu0 %v766
      %960 = vmatprep.subr.bf16.mxu0 %v771
      %961 = vmatpush1.bf16.msra.mxu0 %v770
      %962 = vmatprep.subr.bf16.mxu0 %v775
      %963 = vmatpush1.bf16.msra.mxu0 %v774
      %964 = vmatprep.subr.bf16.mxu0 %v779
      %965 = vmatpush1.bf16.msra.mxu0 %v778
      %966 = vmatprep.subr.bf16.mxu0 %v783
      %967 = vmatpush1.bf16.msra.mxu0 %v782
      %968 = vmatprep.subr.bf16.mxu0 %v787
      %969 = vmatpush1.bf16.msra.mxu0 %v786
      %970 = vmatprep.subr.bf16.mxu0 %v791
      %971 = vmatpush1.bf16.msra.mxu0 %v790
      %972 = vmatprep.subr.bf16.mxu0 %v795
      %973 = vmatpush1.bf16.msra.mxu0 %v794
      %974 = vmatprep.subr.bf16.mxu0 %v799
      %975 = vmatpush1.bf16.msra.mxu0 %v798
      %976 = vmatprep.subr.bf16.mxu0 %v803
      %977 = vmatpush1.bf16.msra.mxu0 %v802
      %978 = vmatprep.subr.bf16.mxu0 %v807
      %979 = vmatpush1.bf16.msra.mxu0 %v806
      %980 = vmatprep.subr.bf16.mxu0 %v811
      %981 = vmatpush1.bf16.msra.mxu0 %v810
      %982 = vmatprep.subr.bf16.mxu0 %v815
      %983 = vmatpush1.bf16.msra.mxu0 %v814
      %984 = vmatprep.subr.bf16.mxu0 %v819
      %985 = vmatpush1.bf16.msra.mxu0 %v818
      %986 = vmatprep.subr.bf16.mxu0 %v823
      %987 = vmatpush1.bf16.msra.mxu0 %v822
      %988 = vmatprep.subr.bf16.mxu0 %v827
      %989 = vmatpush1.bf16.msra.mxu0 %v826
      %990 = vmatprep.mubr.bf16.mxu0 %v473
      %991 = vmatmul.mubr.bf16.gmra.mrb[0].mxu0 %v472
      %v992 = vpop.f32.mrb[0].mxu0
      %v993 = vadd.f32 %v445, %v992
      %v994 = vpop.f32.mrb[0].mxu0
      %v995 = vadd.f32 %v449, %v994
      %v996 = vpop.f32.mrb[0].mxu0
      %v997 = vadd.f32 %v445, %v996
      %v998 = vpop.f32.mrb[0].mxu0
      %v999 = vadd.f32 %v449, %v998
      %1000 = vdwg.mxu0
      %1001 = vmatprep.subr.bf16.mxu0 %v831
      %1002 = vmatpush1.bf16.msra.mxu0 %v830
      %1003 = vmatprep.subr.bf16.mxu0 %v835
      %1004 = vmatpush1.bf16.msra.mxu0 %v834
      %1005 = vmatprep.subr.bf16.mxu0 %v839
      %1006 = vmatpush1.bf16.msra.mxu0 %v838
      %1007 = vmatprep.subr.bf16.mxu0 %v843
      %1008 = vmatpush1.bf16.msra.mxu0 %v842
      %1009 = vmatprep.subr.bf16.mxu0 %v847
      %1010 = vmatpush1.bf16.msra.mxu0 %v846
      %1011 = vmatprep.subr.bf16.mxu0 %v851
      %1012 = vmatpush1.bf16.msra.mxu0 %v850
      %1013 = vmatprep.subr.bf16.mxu0 %v855
      %1014 = vmatpush1.bf16.msra.mxu0 %v854
      %1015 = vmatprep.subr.bf16.mxu0 %v859
      %1016 = vmatpush1.bf16.msra.mxu0 %v858
      %1017 = vmatprep.subr.bf16.mxu0 0
      %1018 = vmatpush1.bf16.msra.mxu0 0
      %1019 = vmatprep.subr.bf16.mxu0 0
      %1020 = vmatpush1.bf16.msra.mxu0 0
      %1021 = vmatprep.subr.bf16.mxu0 0
      %1022 = vmatpush1.bf16.msra.mxu0 0
      %1023 = vmatprep.subr.bf16.mxu0 0
      %1024 = vmatpush1.bf16.msra.mxu0 0
      %1025 = vmatprep.subr.bf16.mxu0 0
      %1026 = vmatpush1.bf16.msra.mxu0 0
      %1027 = vmatprep.subr.bf16.mxu0 0
      %1028 = vmatpush1.bf16.msra.mxu0 0
      %1029 = vmatprep.subr.bf16.mxu0 0
      %1030 = vmatpush1.bf16.msra.mxu0 0
      %1031 = vmatprep.subr.bf16.mxu0 0
      %1032 = vmatpush1.bf16.msra.mxu0 0
      %1033 = vmatprep.mubr.bf16.mxu0 0
      %1034 = vmatmul.mubr.bf16.gmra.mrb[0].mxu0 %v474
      %v1035 = vpop.f32.mrb[0].mxu0
      %v1036 = vadd.f32 %v993, %v1035
      %v1037 = vpop.f32.mrb[0].mxu0
      %v1038 = vadd.f32 %v995, %v1037
      %v1039 = vpop.f32.mrb[0].mxu0
      %v1040 = vadd.f32 %v997, %v1039
      %v1041 = vpop.f32.mrb[0].mxu0
      %v1042 = vadd.f32 %v999, %v1041
      %1043 = vdwg.mxu0
      %1044 = vmatprep.subr.bf16.mxu0 %v769
      %1045 = vmatpush1.bf16.msra.mxu0 %v768
      %1046 = vmatprep.subr.bf16.mxu0 %v773
      %1047 = vmatpush1.bf16.msra.mxu0 %v772
      %1048 = vmatprep.subr.bf16.mxu0 %v777
      %1049 = vmatpush1.bf16.msra.mxu0 %v776
      %1050 = vmatprep.subr.bf16.mxu0 %v781
      %1051 = vmatpush1.bf16.msra.mxu0 %v780
      %1052 = vmatprep.subr.bf16.mxu0 %v785
      %1053 = vmatpush1.bf16.msra.mxu0 %v784
      %1054 = vmatprep.subr.bf16.mxu0 %v789
      %1055 = vmatpush1.bf16.msra.mxu0 %v788
      %1056 = vmatprep.subr.bf16.mxu0 %v793
      %1057 = vmatpush1.bf16.msra.mxu0 %v792
      %1058 = vmatprep.subr.bf16.mxu0 %v797
      %1059 = vmatpush1.bf16.msra.mxu0 %v796
      %1060 = vmatprep.subr.bf16.mxu0 %v801
      %1061 = vmatpush1.bf16.msra.mxu0 %v800
      %1062 = vmatprep.subr.bf16.mxu0 %v805
      %1063 = vmatpush1.bf16.msra.mxu0 %v804
      %1064 = vmatprep.subr.bf16.mxu0 %v809
      %1065 = vmatpush1.bf16.msra.mxu0 %v808
      %1066 = vmatprep.subr.bf16.mxu0 %v813
      %1067 = vmatpush1.bf16.msra.mxu0 %v812
      %1068 = vmatprep.subr.bf16.mxu0 %v817
      %1069 = vmatpush1.bf16.msra.mxu0 %v816
      %1070 = vmatprep.subr.bf16.mxu0 %v821
      %1071 = vmatpush1.bf16.msra.mxu0 %v820
      %1072 = vmatprep.subr.bf16.mxu0 %v825
      %1073 = vmatpush1.bf16.msra.mxu0 %v824
      %1074 = vmatprep.subr.bf16.mxu0 %v829
      %1075 = vmatpush1.bf16.msra.mxu0 %v828
      %1076 = vmatprep.mubr.bf16.mxu0 %v473
      %1077 = vmatmul.mubr.bf16.gmra.mrb[0].mxu0 %v472
      %v1078 = vpop.f32.mrb[0].mxu0
      %v1079 = vadd.f32 %v453, %v1078
      %v1080 = vpop.f32.mrb[0].mxu0
      %v1081 = vadd.f32 %v457, %v1080
      %v1082 = vpop.f32.mrb[0].mxu0
      %v1083 = vadd.f32 %v453, %v1082
      %v1084 = vpop.f32.mrb[0].mxu0
      %v1085 = vadd.f32 %v457, %v1084
      %1086 = vdwg.mxu0
      %1087 = vmatprep.subr.bf16.mxu0 %v833
      %1088 = vmatpush1.bf16.msra.mxu0 %v832
      %1089 = vmatprep.subr.bf16.mxu0 %v837
      %1090 = vmatpush1.bf16.msra.mxu0 %v836
      %1091 = vmatprep.subr.bf16.mxu0 %v841
      %1092 = vmatpush1.bf16.msra.mxu0 %v840
      %1093 = vmatprep.subr.bf16.mxu0 %v845
      %1094 = vmatpush1.bf16.msra.mxu0 %v844
      %1095 = vmatprep.subr.bf16.mxu0 %v849
      %1096 = vmatpush1.bf16.msra.mxu0 %v848
      %1097 = vmatprep.subr.bf16.mxu0 %v853
      %1098 = vmatpush1.bf16.msra.mxu0 %v852
      %1099 = vmatprep.subr.bf16.mxu0 %v857
      %1100 = vmatpush1.bf16.msra.mxu0 %v856
      %1101 = vmatprep.subr.bf16.mxu0 %v861
      %1102 = vmatpush1.bf16.msra.mxu0 %v860
      %1103 = vmatprep.subr.bf16.mxu0 0
      %1104 = vmatpush1.bf16.msra.mxu0 0
      %1105 = vmatprep.subr.bf16.mxu0 0
      %1106 = vmatpush1.bf16.msra.mxu0 0
      %1107 = vmatprep.subr.bf16.mxu0 0
      %1108 = vmatpush1.bf16.msra.mxu0 0
      %1109 = vmatprep.subr.bf16.mxu0 0
      %1110 = vmatpush1.bf16.msra.mxu0 0
      %1111 = vmatprep.subr.bf16.mxu0 0
      %1112 = vmatpush1.bf16.msra.mxu0 0
      %1113 = vmatprep.subr.bf16.mxu0 0
      %1114 = vmatpush1.bf16.msra.mxu0 0
      %1115 = vmatprep.subr.bf16.mxu0 0
      %1116 = vmatpush1.bf16.msra.mxu0 0
      %1117 = vmatprep.subr.bf16.mxu0 0
      %1118 = vmatpush1.bf16.msra.mxu0 0
      %1119 = vmatprep.mubr.bf16.mxu0 0
      %1120 = vmatmul.mubr.bf16.gmra.mrb[0].mxu0 %v474
      %v1121 = vpop.f32.mrb[0].mxu0
      %v1122 = vadd.f32 %v1079, %v1121
      %v1123 = vpop.f32.mrb[0].mxu0
      %v1124 = vadd.f32 %v1081, %v1123
      %v1125 = vpop.f32.mrb[0].mxu0
      %v1126 = vadd.f32 %v1083, %v1125
      %v1127 = vpop.f32.mrb[0].mxu0
      %v1128 = vadd.f32 %v1085, %v1127
      %1129 = vdwg.mxu0
      %v1130 = vpack.c.bf16 %v1040, %v1036
      %v1131 = vpack.c.bf16 %v1042, %v1038
      %v1132 = vpack.c.bf16 %v1126, %v1122
      %v1133 = vpack.c.bf16 %v1128, %v1124
      %v1134 = vld [vmem:[%s4] sm:$0xff]
      %v1135 = vld [vmem:[%s4 + $0x8] sm:$0xff]
      %v1136 = vld [vmem:[%s4 + $0x10] sm:$0xff]
      %v1137 = vld [vmem:[%s4 + $0x18] sm:$0xff]
      %v1138 = vld [vmem:[%s4 + $0x20] sm:$0xff]
      %v1139 = vld [vmem:[%s4 + $0x28] sm:$0xff]
      %v1140 = vld [vmem:[%s4 + $0x30] sm:$0xff]
      %v1141 = vld [vmem:[%s4 + $0x38] sm:$0xff]
      %v1142 = vld [vmem:[%s4 + $0x40] sm:$0xff]
      %v1143 = vld [vmem:[%s4 + $0x48] sm:$0xff]
      %v1144 = vld [vmem:[%s4 + $0x50] sm:$0xff]
      %v1145 = vld [vmem:[%s4 + $0x58] sm:$0xff]
      %v1146 = vld [vmem:[%s4 + $0x60] sm:$0xff]
      %v1147 = vld [vmem:[%s4 + $0x68] sm:$0xff]
      %v1148 = vld [vmem:[%s4 + $0x70] sm:$0xff]
      %v1149 = vld [vmem:[%s4 + $0x78] sm:$0xff]
      %v1150 = vld [vmem:[%s4 + $0x80] sm:$0xff]
      %v1151 = vld [vmem:[%s4 + $0x88] sm:$0xff]
      %v1152 = vld [vmem:[%s4 + $0x90] sm:$0xff]
      %v1153 = vld [vmem:[%s4 + $0x98] sm:$0xff]
      %v1154 = vld [vmem:[%s4 + $0xa0] sm:$0xff]
      %v1155 = vld [vmem:[%s4 + $0xa8] sm:$0xff]
      %v1156 = vld [vmem:[%s4 + $0xb0] sm:$0xff]
      %v1157 = vld [vmem:[%s4 + $0xb8] sm:$0xff]
      %v1158 = vld [vmem:[%s4 + $0xc0] sm:$0xff]
      %v1159 = vld [vmem:[%s4 + $0xc8] sm:$0xff]
      %v1160 = vld [vmem:[%s4 + $0xd0] sm:$0xff]
      %v1161 = vld [vmem:[%s4 + $0xd8] sm:$0xff]
      %v1162 = vld [vmem:[%s4 + $0xe0] sm:$0xff]
      %v1163 = vld [vmem:[%s4 + $0xe8] sm:$0xff]
      %v1164 = vld [vmem:[%s4 + $0xf0] sm:$0xff]
      %v1165 = vld [vmem:[%s4 + $0xf8] sm:$0xff]
      %v1166 = vld [vmem:[%s4 + $0x100] sm:$0xff]
      %v1167 = vld [vmem:[%s4 + $0x108] sm:$0xff]
      %v1168 = vld [vmem:[%s4 + $0x110] sm:$0xff]
      %v1169 = vld [vmem:[%s4 + $0x118] sm:$0xff]
      %v1170 = vld [vmem:[%s4 + $0x120] sm:$0xff]
      %v1171 = vld [vmem:[%s4 + $0x128] sm:$0xff]
      %v1172 = vld [vmem:[%s4 + $0x130] sm:$0xff]
      %v1173 = vld [vmem:[%s4 + $0x138] sm:$0xff]
      %v1174 = vld [vmem:[%s4 + $0x140] sm:$0xff]
      %v1175 = vld [vmem:[%s4 + $0x148] sm:$0xff]
      %v1176 = vld [vmem:[%s4 + $0x150] sm:$0xff]
      %v1177 = vld [vmem:[%s4 + $0x158] sm:$0xff]
      %v1178 = vld [vmem:[%s4 + $0x160] sm:$0xff]
      %v1179 = vld [vmem:[%s4 + $0x168] sm:$0xff]
      %v1180 = vld [vmem:[%s4 + $0x170] sm:$0xff]
      %v1181 = vld [vmem:[%s4 + $0x178] sm:$0xff]
      %v1182 = vld [vmem:[%s4 + $0x180] sm:$0xff]
      %v1183 = vld [vmem:[%s4 + $0x188] sm:$0xff]
      %v1184 = vld [vmem:[%s4 + $0x190] sm:$0xff]
      %v1185 = vld [vmem:[%s4 + $0x198] sm:$0xff]
      %v1186 = vld [vmem:[%s4 + $0x1a0] sm:$0xff]
      %v1187 = vld [vmem:[%s4 + $0x1a8] sm:$0xff]
      %v1188 = vld [vmem:[%s4 + $0x1b0] sm:$0xff]
      %v1189 = vld [vmem:[%s4 + $0x1b8] sm:$0xff]
      %v1190 = vld [vmem:[%s4 + $0x1c0] sm:$0xff]
      %v1191 = vld [vmem:[%s4 + $0x1c8] sm:$0xff]
      %v1192 = vld [vmem:[%s4 + $0x1d0] sm:$0xff]
      %v1193 = vld [vmem:[%s4 + $0x1d8] sm:$0xff]
      %v1194 = vld [vmem:[%s4 + $0x1e0] sm:$0xff]
      %v1195 = vld [vmem:[%s4 + $0x1e8] sm:$0xff]
      %v1196 = vld [vmem:[%s4 + $0x1f0] sm:$0xff]
      %v1197 = vld [vmem:[%s4 + $0x1f8] sm:$0xff]
      %v1198 = vld [vmem:[%s4 + $0x200] sm:$0xff]
      %v1199 = vld [vmem:[%s4 + $0x208] sm:$0xff]
      %v1200 = vld [vmem:[%s4 + $0x210] sm:$0xff]
      %v1201 = vld [vmem:[%s4 + $0x218] sm:$0xff]
      %v1202 = vld [vmem:[%s4 + $0x220] sm:$0xff]
      %v1203 = vld [vmem:[%s4 + $0x228] sm:$0xff]
      %v1204 = vld [vmem:[%s4 + $0x230] sm:$0xff]
      %v1205 = vld [vmem:[%s4 + $0x238] sm:$0xff]
      %v1206 = vld [vmem:[%s4 + $0x240] sm:$0xff]
      %v1207 = vld [vmem:[%s4 + $0x248] sm:$0xff]
      %v1208 = vld [vmem:[%s4 + $0x250] sm:$0xff]
      %v1209 = vld [vmem:[%s4 + $0x258] sm:$0xff]
      %v1210 = vld [vmem:[%s4 + $0x260] sm:$0xff]
      %v1211 = vld [vmem:[%s4 + $0x268] sm:$0xff]
      %v1212 = vld [vmem:[%s4 + $0x270] sm:$0xff]
      %v1213 = vld [vmem:[%s4 + $0x278] sm:$0xff]
      %v1214 = vld [vmem:[%s4 + $0x280] sm:$0xff]
      %v1215 = vld [vmem:[%s4 + $0x288] sm:$0xff]
      %v1216 = vld [vmem:[%s4 + $0x290] sm:$0xff]
      %v1217 = vld [vmem:[%s4 + $0x298] sm:$0xff]
      %v1218 = vld [vmem:[%s4 + $0x2a0] sm:$0xff]
      %v1219 = vld [vmem:[%s4 + $0x2a8] sm:$0xff]
      %v1220 = vld [vmem:[%s4 + $0x2b0] sm:$0xff]
      %v1221 = vld [vmem:[%s4 + $0x2b8] sm:$0xff]
      %v1222 = vld [vmem:[%s4 + $0x2c0] sm:$0xff]
      %v1223 = vld [vmem:[%s4 + $0x2c8] sm:$0xff]
      %v1224 = vld [vmem:[%s4 + $0x2d0] sm:$0xff]
      %v1225 = vld [vmem:[%s4 + $0x2d8] sm:$0xff]
      %v1226 = vld [vmem:[%s4 + $0x2e0] sm:$0xff]
      %v1227 = vld [vmem:[%s4 + $0x2e8] sm:$0xff]
      %v1228 = vld [vmem:[%s4 + $0x2f0] sm:$0xff]
      %v1229 = vld [vmem:[%s4 + $0x2f8] sm:$0xff]
      %v1230 = vld [vmem:[%s4 + $0x300] sm:$0xff]
      %v1231 = vld [vmem:[%s4 + $0x308] sm:$0xff]
      %v1232 = vld [vmem:[%s4 + $0x310] sm:$0xff]
      %v1233 = vld [vmem:[%s4 + $0x318] sm:$0xff]
      %v1234 = vld [vmem:[%s4 + $0x320] sm:$0xff]
      %v1235 = vld [vmem:[%s4 + $0x328] sm:$0xff]
      %v1236 = vld [vmem:[%s4 + $0x330] sm:$0xff]
      %v1237 = vld [vmem:[%s4 + $0x338] sm:$0xff]
      %v1238 = vld [vmem:[%s4 + $0x340] sm:$0xff]
      %v1239 = vld [vmem:[%s4 + $0x348] sm:$0xff]
      %v1240 = vld [vmem:[%s4 + $0x350] sm:$0xff]
      %v1241 = vld [vmem:[%s4 + $0x358] sm:$0xff]
      %v1242 = vld [vmem:[%s4 + $0x360] sm:$0xff]
      %v1243 = vld [vmem:[%s4 + $0x368] sm:$0xff]
      %v1244 = vld [vmem:[%s4 + $0x370] sm:$0xff]
      %v1245 = vld [vmem:[%s4 + $0x378] sm:$0xff]
      %v1246 = vld [vmem:[%s4 + $0x380] sm:$0xff]
      %v1247 = vld [vmem:[%s4 + $0x388] sm:$0xff]
      %v1248 = vld [vmem:[%s4 + $0x390] sm:$0xff]
      %v1249 = vld [vmem:[%s4 + $0x398] sm:$0xff]
      %v1250 = vld [vmem:[%s4 + $0x3a0] sm:$0xff]
      %v1251 = vld [vmem:[%s4 + $0x3a8] sm:$0xff]
      %v1252 = vld [vmem:[%s4 + $0x3b0] sm:$0xff]
      %v1253 = vld [vmem:[%s4 + $0x3b8] sm:$0xff]
      %v1254 = vld [vmem:[%s4 + $0x3c0] sm:$0xff]
      %v1255 = vld [vmem:[%s4 + $0x3c8] sm:$0xff]
      %v1256 = vld [vmem:[%s4 + $0x3d0] sm:$0xff]
      %v1257 = vld [vmem:[%s4 + $0x3d8] sm:$0xff]
      %v1258 = vld [vmem:[%s4 + $0x3e0] sm:$0xff]
      %v1259 = vld [vmem:[%s4 + $0x3e8] sm:$0xff]
      %v1260 = vld [vmem:[%s4 + $0x3f0] sm:$0xff]
      %v1261 = vld [vmem:[%s4 + $0x3f8] sm:$0xff]
      %v1262 = vld [vmem:[%s5] sm:$0xf]
      %v1264 = vlaneseq
      %v1265 = vshrl.u32 %v1264, 7
      %v1266 = vsub.s32 0, %v1265
      %v1267 = vrot.slane %v1262, %v1266
      %v1268 = vlaneseq
      %v1269 = vshrl.u32 %v1268, 7
      %v1270 = vsub.s32 1, %v1269
      %v1271 = vrot.slane %v1262, %v1270
      %v1272 = vlaneseq
      %v1273 = vshrl.u32 %v1272, 7
      %v1274 = vsub.s32 2, %v1273
      %v1275 = vrot.slane %v1262, %v1274
      %v1276 = vlaneseq
      %v1277 = vshrl.u32 %v1276, 7
      %v1278 = vsub.s32 3, %v1277
      %v1279 = vrot.slane %v1262, %v1278
      %v1412 = vunpack.c.l.b16 %v1134
      %v1413 = vunpack.c.h.b16 %v1134
      %v1414 = vunpack.c.l.b16 %v1135
      %v1415 = vunpack.c.h.b16 %v1135
      %v1416 = vunpack.c.l.b16 %v1136
      %v1417 = vunpack.c.h.b16 %v1136
      %v1418 = vunpack.c.l.b16 %v1137
      %v1419 = vunpack.c.h.b16 %v1137
      %v1420 = vunpack.c.l.b16 %v1138
      %v1421 = vunpack.c.h.b16 %v1138
      %v1422 = vunpack.c.l.b16 %v1139
      %v1423 = vunpack.c.h.b16 %v1139
      %v1424 = vunpack.c.l.b16 %v1140
      %v1425 = vunpack.c.h.b16 %v1140
      %v1426 = vunpack.c.l.b16 %v1141
      %v1427 = vunpack.c.h.b16 %v1141
      %v1428 = vunpack.c.l.b16 %v1142
      %v1429 = vunpack.c.h.b16 %v1142
      %v1430 = vunpack.c.l.b16 %v1143
      %v1431 = vunpack.c.h.b16 %v1143
      %v1432 = vunpack.c.l.b16 %v1144
      %v1433 = vunpack.c.h.b16 %v1144
      %v1434 = vunpack.c.l.b16 %v1145
      %v1435 = vunpack.c.h.b16 %v1145
      %v1436 = vunpack.c.l.b16 %v1146
      %v1437 = vunpack.c.h.b16 %v1146
      %v1438 = vunpack.c.l.b16 %v1147
      %v1439 = vunpack.c.h.b16 %v1147
      %v1440 = vunpack.c.l.b16 %v1148
      %v1441 = vunpack.c.h.b16 %v1148
      %v1442 = vunpack.c.l.b16 %v1149
      %v1443 = vunpack.c.h.b16 %v1149
      %v1444 = vunpack.c.l.b16 %v1150
      %v1445 = vunpack.c.h.b16 %v1150
      %v1446 = vunpack.c.l.b16 %v1151
      %v1447 = vunpack.c.h.b16 %v1151
      %v1448 = vunpack.c.l.b16 %v1152
      %v1449 = vunpack.c.h.b16 %v1152
      %v1450 = vunpack.c.l.b16 %v1153
      %v1451 = vunpack.c.h.b16 %v1153
      %v1452 = vunpack.c.l.b16 %v1154
      %v1453 = vunpack.c.h.b16 %v1154
      %v1454 = vunpack.c.l.b16 %v1155
      %v1455 = vunpack.c.h.b16 %v1155
      %v1456 = vunpack.c.l.b16 %v1156
      %v1457 = vunpack.c.h.b16 %v1156
      %v1458 = vunpack.c.l.b16 %v1157
      %v1459 = vunpack.c.h.b16 %v1157
      %v1460 = vunpack.c.l.b16 %v1158
      %v1461 = vunpack.c.h.b16 %v1158
      %v1462 = vunpack.c.l.b16 %v1159
      %v1463 = vunpack.c.h.b16 %v1159
      %v1464 = vunpack.c.l.b16 %v1160
      %v1465 = vunpack.c.h.b16 %v1160
      %v1466 = vunpack.c.l.b16 %v1161
      %v1467 = vunpack.c.h.b16 %v1161
      %v1468 = vunpack.c.l.b16 %v1162
      %v1469 = vunpack.c.h.b16 %v1162
      %v1470 = vunpack.c.l.b16 %v1163
      %v1471 = vunpack.c.h.b16 %v1163
      %v1472 = vunpack.c.l.b16 %v1164
      %v1473 = vunpack.c.h.b16 %v1164
      %v1474 = vunpack.c.l.b16 %v1165
      %v1475 = vunpack.c.h.b16 %v1165
      %v1476 = vunpack.c.l.b16 %v1166
      %v1477 = vunpack.c.h.b16 %v1166
      %v1478 = vunpack.c.l.b16 %v1167
      %v1479 = vunpack.c.h.b16 %v1167
      %v1480 = vunpack.c.l.b16 %v1168
      %v1481 = vunpack.c.h.b16 %v1168
      %v1482 = vunpack.c.l.b16 %v1169
      %v1483 = vunpack.c.h.b16 %v1169
      %v1484 = vunpack.c.l.b16 %v1170
      %v1485 = vunpack.c.h.b16 %v1170
      %v1486 = vunpack.c.l.b16 %v1171
      %v1487 = vunpack.c.h.b16 %v1171
      %v1488 = vunpack.c.l.b16 %v1172
      %v1489 = vunpack.c.h.b16 %v1172
      %v1490 = vunpack.c.l.b16 %v1173
      %v1491 = vunpack.c.h.b16 %v1173
      %v1492 = vunpack.c.l.b16 %v1174
      %v1493 = vunpack.c.h.b16 %v1174
      %v1494 = vunpack.c.l.b16 %v1175
      %v1495 = vunpack.c.h.b16 %v1175
      %v1496 = vunpack.c.l.b16 %v1176
      %v1497 = vunpack.c.h.b16 %v1176
      %v1498 = vunpack.c.l.b16 %v1177
      %v1499 = vunpack.c.h.b16 %v1177
      %v1500 = vunpack.c.l.b16 %v1178
      %v1501 = vunpack.c.h.b16 %v1178
      %v1502 = vunpack.c.l.b16 %v1179
      %v1503 = vunpack.c.h.b16 %v1179
      %v1504 = vunpack.c.l.b16 %v1180
      %v1505 = vunpack.c.h.b16 %v1180
      %v1506 = vunpack.c.l.b16 %v1181
      %v1507 = vunpack.c.h.b16 %v1181
      %v1508 = vunpack.c.l.b16 %v1182
      %v1509 = vunpack.c.h.b16 %v1182
      %v1510 = vunpack.c.l.b16 %v1183
      %v1511 = vunpack.c.h.b16 %v1183
      %v1512 = vunpack.c.l.b16 %v1184
      %v1513 = vunpack.c.h.b16 %v1184
      %v1514 = vunpack.c.l.b16 %v1185
      %v1515 = vunpack.c.h.b16 %v1185
      %v1516 = vunpack.c.l.b16 %v1186
      %v1517 = vunpack.c.h.b16 %v1186
      %v1518 = vunpack.c.l.b16 %v1187
      %v1519 = vunpack.c.h.b16 %v1187
      %v1520 = vunpack.c.l.b16 %v1188
      %v1521 = vunpack.c.h.b16 %v1188
      %v1522 = vunpack.c.l.b16 %v1189
      %v1523 = vunpack.c.h.b16 %v1189
      %v1524 = vunpack.c.l.b16 %v1190
      %v1525 = vunpack.c.h.b16 %v1190
      %v1526 = vunpack.c.l.b16 %v1191
      %v1527 = vunpack.c.h.b16 %v1191
      %v1528 = vunpack.c.l.b16 %v1192
      %v1529 = vunpack.c.h.b16 %v1192
      %v1530 = vunpack.c.l.b16 %v1193
      %v1531 = vunpack.c.h.b16 %v1193
      %v1532 = vunpack.c.l.b16 %v1194
      %v1533 = vunpack.c.h.b16 %v1194
      %v1534 = vunpack.c.l.b16 %v1195
      %v1535 = vunpack.c.h.b16 %v1195
      %v1536 = vunpack.c.l.b16 %v1196
      %v1537 = vunpack.c.h.b16 %v1196
      %v1538 = vunpack.c.l.b16 %v1197
      %v1539 = vunpack.c.h.b16 %v1197
      %v1540 = vunpack.c.l.b16 %v1198
      %v1541 = vunpack.c.h.b16 %v1198
      %v1542 = vunpack.c.l.b16 %v1199
      %v1543 = vunpack.c.h.b16 %v1199
      %v1544 = vunpack.c.l.b16 %v1200
      %v1545 = vunpack.c.h.b16 %v1200
      %v1546 = vunpack.c.l.b16 %v1201
      %v1547 = vunpack.c.h.b16 %v1201
      %v1548 = vunpack.c.l.b16 %v1202
      %v1549 = vunpack.c.h.b16 %v1202
      %v1550 = vunpack.c.l.b16 %v1203
      %v1551 = vunpack.c.h.b16 %v1203
      %v1552 = vunpack.c.l.b16 %v1204
      %v1553 = vunpack.c.h.b16 %v1204
      %v1554 = vunpack.c.l.b16 %v1205
      %v1555 = vunpack.c.h.b16 %v1205
      %v1556 = vunpack.c.l.b16 %v1206
      %v1557 = vunpack.c.h.b16 %v1206
      %v1558 = vunpack.c.l.b16 %v1207
      %v1559 = vunpack.c.h.b16 %v1207
      %v1560 = vunpack.c.l.b16 %v1208
      %v1561 = vunpack.c.h.b16 %v1208
      %v1562 = vunpack.c.l.b16 %v1209
      %v1563 = vunpack.c.h.b16 %v1209
      %v1564 = vunpack.c.l.b16 %v1210
      %v1565 = vunpack.c.h.b16 %v1210
      %v1566 = vunpack.c.l.b16 %v1211
      %v1567 = vunpack.c.h.b16 %v1211
      %v1568 = vunpack.c.l.b16 %v1212
      %v1569 = vunpack.c.h.b16 %v1212
      %v1570 = vunpack.c.l.b16 %v1213
      %v1571 = vunpack.c.h.b16 %v1213
      %v1572 = vunpack.c.l.b16 %v1214
      %v1573 = vunpack.c.h.b16 %v1214
      %v1574 = vunpack.c.l.b16 %v1215
      %v1575 = vunpack.c.h.b16 %v1215
      %v1576 = vunpack.c.l.b16 %v1216
      %v1577 = vunpack.c.h.b16 %v1216
      %v1578 = vunpack.c.l.b16 %v1217
      %v1579 = vunpack.c.h.b16 %v1217
      %v1580 = vunpack.c.l.b16 %v1218
      %v1581 = vunpack.c.h.b16 %v1218
      %v1582 = vunpack.c.l.b16 %v1219
      %v1583 = vunpack.c.h.b16 %v1219
      %v1584 = vunpack.c.l.b16 %v1220
      %v1585 = vunpack.c.h.b16 %v1220
      %v1586 = vunpack.c.l.b16 %v1221
      %v1587 = vunpack.c.h.b16 %v1221
      %v1588 = vunpack.c.l.b16 %v1222
      %v1589 = vunpack.c.h.b16 %v1222
      %v1590 = vunpack.c.l.b16 %v1223
      %v1591 = vunpack.c.h.b16 %v1223
      %v1592 = vunpack.c.l.b16 %v1224
      %v1593 = vunpack.c.h.b16 %v1224
      %v1594 = vunpack.c.l.b16 %v1225
      %v1595 = vunpack.c.h.b16 %v1225
      %v1596 = vunpack.c.l.b16 %v1226
      %v1597 = vunpack.c.h.b16 %v1226
      %v1598 = vunpack.c.l.b16 %v1227
      %v1599 = vunpack.c.h.b16 %v1227
      %v1600 = vunpack.c.l.b16 %v1228
      %v1601 = vunpack.c.h.b16 %v1228
      %v1602 = vunpack.c.l.b16 %v1229
      %v1603 = vunpack.c.h.b16 %v1229
      %v1604 = vunpack.c.l.b16 %v1230
      %v1605 = vunpack.c.h.b16 %v1230
      %v1606 = vunpack.c.l.b16 %v1231
      %v1607 = vunpack.c.h.b16 %v1231
      %v1608 = vunpack.c.l.b16 %v1232
      %v1609 = vunpack.c.h.b16 %v1232
      %v1610 = vunpack.c.l.b16 %v1233
      %v1611 = vunpack.c.h.b16 %v1233
      %v1612 = vunpack.c.l.b16 %v1234
      %v1613 = vunpack.c.h.b16 %v1234
      %v1614 = vunpack.c.l.b16 %v1235
      %v1615 = vunpack.c.h.b16 %v1235
      %v1616 = vunpack.c.l.b16 %v1236
      %v1617 = vunpack.c.h.b16 %v1236
      %v1618 = vunpack.c.l.b16 %v1237
      %v1619 = vunpack.c.h.b16 %v1237
      %v1620 = vunpack.c.l.b16 %v1238
      %v1621 = vunpack.c.h.b16 %v1238
      %v1622 = vunpack.c.l.b16 %v1239
      %v1623 = vunpack.c.h.b16 %v1239
      %v1624 = vunpack.c.l.b16 %v1240
      %v1625 = vunpack.c.h.b16 %v1240
      %v1626 = vunpack.c.l.b16 %v1241
      %v1627 = vunpack.c.h.b16 %v1241
      %v1628 = vunpack.c.l.b16 %v1242
      %v1629 = vunpack.c.h.b16 %v1242
      %v1630 = vunpack.c.l.b16 %v1243
      %v1631 = vunpack.c.h.b16 %v1243
      %v1632 = vunpack.c.l.b16 %v1244
      %v1633 = vunpack.c.h.b16 %v1244
      %v1634 = vunpack.c.l.b16 %v1245
      %v1635 = vunpack.c.h.b16 %v1245
      %v1636 = vunpack.c.l.b16 %v1246
      %v1637 = vunpack.c.h.b16 %v1246
      %v1638 = vunpack.c.l.b16 %v1247
      %v1639 = vunpack.c.h.b16 %v1247
      %v1640 = vunpack.c.l.b16 %v1248
      %v1641 = vunpack.c.h.b16 %v1248
      %v1642 = vunpack.c.l.b16 %v1249
      %v1643 = vunpack.c.h.b16 %v1249
      %v1644 = vunpack.c.l.b16 %v1250
      %v1645 = vunpack.c.h.b16 %v1250
      %v1646 = vunpack.c.l.b16 %v1251
      %v1647 = vunpack.c.h.b16 %v1251
      %v1648 = vunpack.c.l.b16 %v1252
      %v1649 = vunpack.c.h.b16 %v1252
      %v1650 = vunpack.c.l.b16 %v1253
      %v1651 = vunpack.c.h.b16 %v1253
      %v1652 = vunpack.c.l.b16 %v1254
      %v1653 = vunpack.c.h.b16 %v1254
      %v1654 = vunpack.c.l.b16 %v1255
      %v1655 = vunpack.c.h.b16 %v1255
      %v1656 = vunpack.c.l.b16 %v1256
      %v1657 = vunpack.c.h.b16 %v1256
      %v1658 = vunpack.c.l.b16 %v1257
      %v1659 = vunpack.c.h.b16 %v1257
      %v1660 = vunpack.c.l.b16 %v1258
      %v1661 = vunpack.c.h.b16 %v1258
      %v1662 = vunpack.c.l.b16 %v1259
      %v1663 = vunpack.c.h.b16 %v1259
      %v1664 = vunpack.c.l.b16 %v1260
      %v1665 = vunpack.c.h.b16 %v1260
      %v1666 = vunpack.c.l.b16 %v1261
      %v1667 = vunpack.c.h.b16 %v1261
      %v1668 = vpack.c.b16 %v1416, %v1412
      %v1669 = vpack.c.b16 %v1417, %v1413
      %v1670 = vpack.c.b16 %v1418, %v1414
      %v1671 = vpack.c.b16 %v1419, %v1415
      %v1672 = vpack.c.b16 %v1424, %v1420
      %v1673 = vpack.c.b16 %v1425, %v1421
      %v1674 = vpack.c.b16 %v1426, %v1422
      %v1675 = vpack.c.b16 %v1427, %v1423
      %v1676 = vpack.c.b16 %v1432, %v1428
      %v1677 = vpack.c.b16 %v1433, %v1429
      %v1678 = vpack.c.b16 %v1434, %v1430
      %v1679 = vpack.c.b16 %v1435, %v1431
      %v1680 = vpack.c.b16 %v1440, %v1436
      %v1681 = vpack.c.b16 %v1441, %v1437
      %v1682 = vpack.c.b16 %v1442, %v1438
      %v1683 = vpack.c.b16 %v1443, %v1439
      %v1684 = vpack.c.b16 %v1448, %v1444
      %v1685 = vpack.c.b16 %v1449, %v1445
      %v1686 = vpack.c.b16 %v1450, %v1446
      %v1687 = vpack.c.b16 %v1451, %v1447
      %v1688 = vpack.c.b16 %v1456, %v1452
      %v1689 = vpack.c.b16 %v1457, %v1453
      %v1690 = vpack.c.b16 %v1458, %v1454
      %v1691 = vpack.c.b16 %v1459, %v1455
      %v1692 = vpack.c.b16 %v1464, %v1460
      %v1693 = vpack.c.b16 %v1465, %v1461
      %v1694 = vpack.c.b16 %v1466, %v1462
      %v1695 = vpack.c.b16 %v1467, %v1463
      %v1696 = vpack.c.b16 %v1472, %v1468
      %v1697 = vpack.c.b16 %v1473, %v1469
      %v1698 = vpack.c.b16 %v1474, %v1470
      %v1699 = vpack.c.b16 %v1475, %v1471
      %v1700 = vpack.c.b16 %v1480, %v1476
      %v1701 = vpack.c.b16 %v1481, %v1477
      %v1702 = vpack.c.b16 %v1482, %v1478
      %v1703 = vpack.c.b16 %v1483, %v1479
      %v1704 = vpack.c.b16 %v1488, %v1484
      %v1705 = vpack.c.b16 %v1489, %v1485
      %v1706 = vpack.c.b16 %v1490, %v1486
      %v1707 = vpack.c.b16 %v1491, %v1487
      %v1708 = vpack.c.b16 %v1496, %v1492
      %v1709 = vpack.c.b16 %v1497, %v1493
      %v1710 = vpack.c.b16 %v1498, %v1494
      %v1711 = vpack.c.b16 %v1499, %v1495
      %v1712 = vpack.c.b16 %v1504, %v1500
      %v1713 = vpack.c.b16 %v1505, %v1501
      %v1714 = vpack.c.b16 %v1506, %v1502
      %v1715 = vpack.c.b16 %v1507, %v1503
      %v1716 = vpack.c.b16 %v1512, %v1508
      %v1717 = vpack.c.b16 %v1513, %v1509
      %v1718 = vpack.c.b16 %v1514, %v1510
      %v1719 = vpack.c.b16 %v1515, %v1511
      %v1720 = vpack.c.b16 %v1520, %v1516
      %v1721 = vpack.c.b16 %v1521, %v1517
      %v1722 = vpack.c.b16 %v1522, %v1518
      %v1723 = vpack.c.b16 %v1523, %v1519
      %v1724 = vpack.c.b16 %v1528, %v1524
      %v1725 = vpack.c.b16 %v1529, %v1525
      %v1726 = vpack.c.b16 %v1530, %v1526
      %v1727 = vpack.c.b16 %v1531, %v1527
      %v1728 = vpack.c.b16 %v1536, %v1532
      %v1729 = vpack.c.b16 %v1537, %v1533
      %v1730 = vpack.c.b16 %v1538, %v1534
      %v1731 = vpack.c.b16 %v1539, %v1535
      %v1732 = vpack.c.b16 %v1544, %v1540
      %v1733 = vpack.c.b16 %v1545, %v1541
      %v1734 = vpack.c.b16 %v1546, %v1542
      %v1735 = vpack.c.b16 %v1547, %v1543
      %v1736 = vpack.c.b16 %v1552, %v1548
      %v1737 = vpack.c.b16 %v1553, %v1549
      %v1738 = vpack.c.b16 %v1554, %v1550
      %v1739 = vpack.c.b16 %v1555, %v1551
      %v1740 = vpack.c.b16 %v1560, %v1556
      %v1741 = vpack.c.b16 %v1561, %v1557
      %v1742 = vpack.c.b16 %v1562, %v1558
      %v1743 = vpack.c.b16 %v1563, %v1559
      %v1744 = vpack.c.b16 %v1568, %v1564
      %v1745 = vpack.c.b16 %v1569, %v1565
      %v1746 = vpack.c.b16 %v1570, %v1566
      %v1747 = vpack.c.b16 %v1571, %v1567
      %v1748 = vpack.c.b16 %v1576, %v1572
      %v1749 = vpack.c.b16 %v1577, %v1573
      %v1750 = vpack.c.b16 %v1578, %v1574
      %v1751 = vpack.c.b16 %v1579, %v1575
      %v1752 = vpack.c.b16 %v1584, %v1580
      %v1753 = vpack.c.b16 %v1585, %v1581
      %v1754 = vpack.c.b16 %v1586, %v1582
      %v1755 = vpack.c.b16 %v1587, %v1583
      %v1756 = vpack.c.b16 %v1592, %v1588
      %v1757 = vpack.c.b16 %v1593, %v1589
      %v1758 = vpack.c.b16 %v1594, %v1590
      %v1759 = vpack.c.b16 %v1595, %v1591
      %v1760 = vpack.c.b16 %v1600, %v1596
      %v1761 = vpack.c.b16 %v1601, %v1597
      %v1762 = vpack.c.b16 %v1602, %v1598
      %v1763 = vpack.c.b16 %v1603, %v1599
      %v1764 = vpack.c.b16 %v1608, %v1604
      %v1765 = vpack.c.b16 %v1609, %v1605
      %v1766 = vpack.c.b16 %v1610, %v1606
      %v1767 = vpack.c.b16 %v1611, %v1607
      %v1768 = vpack.c.b16 %v1616, %v1612
      %v1769 = vpack.c.b16 %v1617, %v1613
      %v1770 = vpack.c.b16 %v1618, %v1614
      %v1771 = vpack.c.b16 %v1619, %v1615
      %v1772 = vpack.c.b16 %v1624, %v1620
      %v1773 = vpack.c.b16 %v1625, %v1621
      %v1774 = vpack.c.b16 %v1626, %v1622
      %v1775 = vpack.c.b16 %v1627, %v1623
      %v1776 = vpack.c.b16 %v1632, %v1628
      %v1777 = vpack.c.b16 %v1633, %v1629
      %v1778 = vpack.c.b16 %v1634, %v1630
      %v1779 = vpack.c.b16 %v1635, %v1631
      %v1780 = vpack.c.b16 %v1640, %v1636
      %v1781 = vpack.c.b16 %v1641, %v1637
      %v1782 = vpack.c.b16 %v1642, %v1638
      %v1783 = vpack.c.b16 %v1643, %v1639
      %v1784 = vpack.c.b16 %v1648, %v1644
      %v1785 = vpack.c.b16 %v1649, %v1645
      %v1786 = vpack.c.b16 %v1650, %v1646
      %v1787 = vpack.c.b16 %v1651, %v1647
      %v1788 = vpack.c.b16 %v1656, %v1652
      %v1789 = vpack.c.b16 %v1657, %v1653
      %v1790 = vpack.c.b16 %v1658, %v1654
      %v1791 = vpack.c.b16 %v1659, %v1655
      %v1792 = vpack.c.b16 %v1664, %v1660
      %v1793 = vpack.c.b16 %v1665, %v1661
      %v1794 = vpack.c.b16 %v1666, %v1662
      %v1795 = vpack.c.b16 %v1667, %v1663
      %1924 = vmatprep.subr.bf16.mxu0 %v1669
      %1925 = vmatpush1.bf16.msra.mxu0 %v1668
      %1926 = vmatprep.subr.bf16.mxu0 %v1673
      %1927 = vmatpush1.bf16.msra.mxu0 %v1672
      %1928 = vmatprep.subr.bf16.mxu0 %v1677
      %1929 = vmatpush1.bf16.msra.mxu0 %v1676
      %1930 = vmatprep.subr.bf16.mxu0 %v1681
      %1931 = vmatpush1.bf16.msra.mxu0 %v1680
      %1932 = vmatprep.subr.bf16.mxu0 %v1685
      %1933 = vmatpush1.bf16.msra.mxu0 %v1684
      %1934 = vmatprep.subr.bf16.mxu0 %v1689
      %1935 = vmatpush1.bf16.msra.mxu0 %v1688
      %1936 = vmatprep.subr.bf16.mxu0 %v1693
      %1937 = vmatpush1.bf16.msra.mxu0 %v1692
      %1938 = vmatprep.subr.bf16.mxu0 %v1697
      %1939 = vmatpush1.bf16.msra.mxu0 %v1696
      %1940 = vmatprep.subr.bf16.mxu0 %v1701
      %1941 = vmatpush1.bf16.msra.mxu0 %v1700
      %1942 = vmatprep.subr.bf16.mxu0 %v1705
      %1943 = vmatpush1.bf16.msra.mxu0 %v1704
      %1944 = vmatprep.subr.bf16.mxu0 %v1709
      %1945 = vmatpush1.bf16.msra.mxu0 %v1708
      %1946 = vmatprep.subr.bf16.mxu0 %v1713
      %1947 = vmatpush1.bf16.msra.mxu0 %v1712
      %1948 = vmatprep.subr.bf16.mxu0 %v1717
      %1949 = vmatpush1.bf16.msra.mxu0 %v1716
      %1950 = vmatprep.subr.bf16.mxu0 %v1721
      %1951 = vmatpush1.bf16.msra.mxu0 %v1720
      %1952 = vmatprep.subr.bf16.mxu0 %v1725
      %1953 = vmatpush1.bf16.msra.mxu0 %v1724
      %1954 = vmatprep.subr.bf16.mxu0 %v1729
      %1955 = vmatpush1.bf16.msra.mxu0 %v1728
      %1956 = vmatprep.mubr.bf16.mxu0 %v1131
      %1957 = vmatmul.mubr.bf16.gmra.mrb[0].mxu0 %v1130
      %v1958 = vpop.f32.mrb[0].mxu0
      %v1959 = vadd.f32 %v1267, %v1958
      %v1960 = vpop.f32.mrb[0].mxu0
      %v1961 = vadd.f32 %v1271, %v1960
      %v1962 = vpop.f32.mrb[0].mxu0
      %v1963 = vadd.f32 %v1267, %v1962
      %v1964 = vpop.f32.mrb[0].mxu0
      %v1965 = vadd.f32 %v1271, %v1964
      %1966 = vdwg.mxu0
      %1967 = vmatprep.subr.bf16.mxu0 %v1733
      %1968 = vmatpush1.bf16.msra.mxu0 %v1732
      %1969 = vmatprep.subr.bf16.mxu0 %v1737
      %1970 = vmatpush1.bf16.msra.mxu0 %v1736
      %1971 = vmatprep.subr.bf16.mxu0 %v1741
      %1972 = vmatpush1.bf16.msra.mxu0 %v1740
      %1973 = vmatprep.subr.bf16.mxu0 %v1745
      %1974 = vmatpush1.bf16.msra.mxu0 %v1744
      %1975 = vmatprep.subr.bf16.mxu0 %v1749
      %1976 = vmatpush1.bf16.msra.mxu0 %v1748
      %1977 = vmatprep.subr.bf16.mxu0 %v1753
      %1978 = vmatpush1.bf16.msra.mxu0 %v1752
      %1979 = vmatprep.subr.bf16.mxu0 %v1757
      %1980 = vmatpush1.bf16.msra.mxu0 %v1756
      %1981 = vmatprep.subr.bf16.mxu0 %v1761
      %1982 = vmatpush1.bf16.msra.mxu0 %v1760
      %1983 = vmatprep.subr.bf16.mxu0 %v1765
      %1984 = vmatpush1.bf16.msra.mxu0 %v1764
      %1985 = vmatprep.subr.bf16.mxu0 %v1769
      %1986 = vmatpush1.bf16.msra.mxu0 %v1768
      %1987 = vmatprep.subr.bf16.mxu0 %v1773
      %1988 = vmatpush1.bf16.msra.mxu0 %v1772
      %1989 = vmatprep.subr.bf16.mxu0 %v1777
      %1990 = vmatpush1.bf16.msra.mxu0 %v1776
      %1991 = vmatprep.subr.bf16.mxu0 %v1781
      %1992 = vmatpush1.bf16.msra.mxu0 %v1780
      %1993 = vmatprep.subr.bf16.mxu0 %v1785
      %1994 = vmatpush1.bf16.msra.mxu0 %v1784
      %1995 = vmatprep.subr.bf16.mxu0 %v1789
      %1996 = vmatpush1.bf16.msra.mxu0 %v1788
      %1997 = vmatprep.subr.bf16.mxu0 %v1793
      %1998 = vmatpush1.bf16.msra.mxu0 %v1792
      %1999 = vmatprep.mubr.bf16.mxu0 %v1133
      %2000 = vmatmul.mubr.bf16.gmra.mrb[0].mxu0 %v1132
      %v2001 = vpop.f32.mrb[0].mxu0
      %v2002 = vadd.f32 %v1959, %v2001
      %v2003 = vpop.f32.mrb[0].mxu0
      %v2004 = vadd.f32 %v1961, %v2003
      %v2005 = vpop.f32.mrb[0].mxu0
      %v2006 = vadd.f32 %v1963, %v2005
      %v2007 = vpop.f32.mrb[0].mxu0
      %v2008 = vadd.f32 %v1965, %v2007
      %2009 = vdwg.mxu0
      %2010 = vmatprep.subr.bf16.mxu0 %v1671
      %2011 = vmatpush1.bf16.msra.mxu0 %v1670
      %2012 = vmatprep.subr.bf16.mxu0 %v1675
      %2013 = vmatpush1.bf16.msra.mxu0 %v1674
      %2014 = vmatprep.subr.bf16.mxu0 %v1679
      %2015 = vmatpush1.bf16.msra.mxu0 %v1678
      %2016 = vmatprep.subr.bf16.mxu0 %v1683
      %2017 = vmatpush1.bf16.msra.mxu0 %v1682
      %2018 = vmatprep.subr.bf16.mxu0 %v1687
      %2019 = vmatpush1.bf16.msra.mxu0 %v1686
      %2020 = vmatprep.subr.bf16.mxu0 %v1691
      %2021 = vmatpush1.bf16.msra.mxu0 %v1690
      %2022 = vmatprep.subr.bf16.mxu0 %v1695
      %2023 = vmatpush1.bf16.msra.mxu0 %v1694
      %2024 = vmatprep.subr.bf16.mxu0 %v1699
      %2025 = vmatpush1.bf16.msra.mxu0 %v1698
      %2026 = vmatprep.subr.bf16.mxu0 %v1703
      %2027 = vmatpush1.bf16.msra.mxu0 %v1702
      %2028 = vmatprep.subr.bf16.mxu0 %v1707
      %2029 = vmatpush1.bf16.msra.mxu0 %v1706
      %2030 = vmatprep.subr.bf16.mxu0 %v1711
      %2031 = vmatpush1.bf16.msra.mxu0 %v1710
      %2032 = vmatprep.subr.bf16.mxu0 %v1715
      %2033 = vmatpush1.bf16.msra.mxu0 %v1714
      %2034 = vmatprep.subr.bf16.mxu0 %v1719
      %2035 = vmatpush1.bf16.msra.mxu0 %v1718
      %2036 = vmatprep.subr.bf16.mxu0 %v1723
      %2037 = vmatpush1.bf16.msra.mxu0 %v1722
      %2038 = vmatprep.subr.bf16.mxu0 %v1727
      %2039 = vmatpush1.bf16.msra.mxu0 %v1726
      %2040 = vmatprep.subr.bf16.mxu0 %v1731
      %2041 = vmatpush1.bf16.msra.mxu0 %v1730
      %2042 = vmatprep.mubr.bf16.mxu0 %v1131
      %2043 = vmatmul.mubr.bf16.gmra.mrb[0].mxu0 %v1130
      %v2044 = vpop.f32.mrb[0].mxu0
      %v2045 = vadd.f32 %v1275, %v2044
      %v2046 = vpop.f32.mrb[0].mxu0
      %v2047 = vadd.f32 %v1279, %v2046
      %v2048 = vpop.f32.mrb[0].mxu0
      %v2049 = vadd.f32 %v1275, %v2048
      %v2050 = vpop.f32.mrb[0].mxu0
      %v2051 = vadd.f32 %v1279, %v2050
      %2052 = vdwg.mxu0
      %2053 = vmatprep.subr.bf16.mxu0 %v1735
      %2054 = vmatpush1.bf16.msra.mxu0 %v1734
      %2055 = vmatprep.subr.bf16.mxu0 %v1739
      %2056 = vmatpush1.bf16.msra.mxu0 %v1738
      %2057 = vmatprep.subr.bf16.mxu0 %v1743
      %2058 = vmatpush1.bf16.msra.mxu0 %v1742
      %2059 = vmatprep.subr.bf16.mxu0 %v1747
      %2060 = vmatpush1.bf16.msra.mxu0 %v1746
      %2061 = vmatprep.subr.bf16.mxu0 %v1751
      %2062 = vmatpush1.bf16.msra.mxu0 %v1750
      %2063 = vmatprep.subr.bf16.mxu0 %v1755
      %2064 = vmatpush1.bf16.msra.mxu0 %v1754
      %2065 = vmatprep.subr.bf16.mxu0 %v1759
      %2066 = vmatpush1.bf16.msra.mxu0 %v1758
      %2067 = vmatprep.subr.bf16.mxu0 %v1763
      %2068 = vmatpush1.bf16.msra.mxu0 %v1762
      %2069 = vmatprep.subr.bf16.mxu0 %v1767
      %2070 = vmatpush1.bf16.msra.mxu0 %v1766
      %2071 = vmatprep.subr.bf16.mxu0 %v1771
      %2072 = vmatpush1.bf16.msra.mxu0 %v1770
      %2073 = vmatprep.subr.bf16.mxu0 %v1775
      %2074 = vmatpush1.bf16.msra.mxu0 %v1774
      %2075 = vmatprep.subr.bf16.mxu0 %v1779
      %2076 = vmatpush1.bf16.msra.mxu0 %v1778
      %2077 = vmatprep.subr.bf16.mxu0 %v1783
      %2078 = vmatpush1.bf16.msra.mxu0 %v1782
      %2079 = vmatprep.subr.bf16.mxu0 %v1787
      %2080 = vmatpush1.bf16.msra.mxu0 %v1786
      %2081 = vmatprep.subr.bf16.mxu0 %v1791
      %2082 = vmatpush1.bf16.msra.mxu0 %v1790
      %2083 = vmatprep.subr.bf16.mxu0 %v1795
      %2084 = vmatpush1.bf16.msra.mxu0 %v1794
      %2085 = vmatprep.mubr.bf16.mxu0 %v1133
      %2086 = vmatmul.mubr.bf16.gmra.mrb[0].mxu0 %v1132
      %v2087 = vpop.f32.mrb[0].mxu0
      %v2088 = vadd.f32 %v2045, %v2087
      %v2089 = vpop.f32.mrb[0].mxu0
      %v2090 = vadd.f32 %v2047, %v2089
      %v2091 = vpop.f32.mrb[0].mxu0
      %v2092 = vadd.f32 %v2049, %v2091
      %v2093 = vpop.f32.mrb[0].mxu0
      %v2094 = vadd.f32 %v2051, %v2093
      %2095 = vdwg.mxu0
      %v2096 = vmul.f32 %v2002, 0.5
      %v2097 = vmul.f32 %v2004, 0.5
      %v2098 = vmul.f32 %v2088, 0.5
      %v2099 = vmul.f32 %v2090, 0.5
      %v2100 = vmul.f32 %v2006, 0.5
      %v2101 = vmul.f32 %v2008, 0.5
      %v2102 = vmul.f32 %v2092, 0.5
      %v2103 = vmul.f32 %v2094, 0.5
      %v2104 = vmul.f32 %v2002, 0.70710677
      %v2105 = vmul.f32 %v2004, 0.70710677
      %v2106 = vmul.f32 %v2088, 0.70710677
      %v2107 = vmul.f32 %v2090, 0.70710677
      %v2108 = vmul.f32 %v2006, 0.70710677
      %v2109 = vmul.f32 %v2008, 0.70710677
      %v2110 = vmul.f32 %v2092, 0.70710677
      %v2111 = vmul.f32 %v2094, 0.70710677
      %v2112 = verf.f32.pop %v2104
      %v2113 = verf.f32.pop %v2105
      %v2114 = verf.f32.pop %v2106
      %v2115 = verf.f32.pop %v2107
      %v2116 = verf.f32.pop %v2108
      %v2117 = verf.f32.pop %v2109
      %v2118 = verf.f32.pop %v2110
      %v2119 = verf.f32.pop %v2111
      %v2120 = vadd.f32 %v2112, 1.0
      %v2121 = vadd.f32 %v2113, 1.0
      %v2122 = vadd.f32 %v2114, 1.0
      %v2123 = vadd.f32 %v2115, 1.0
      %v2124 = vadd.f32 %v2116, 1.0
      %v2125 = vadd.f32 %v2117, 1.0
      %v2126 = vadd.f32 %v2118, 1.0
      %v2127 = vadd.f32 %v2119, 1.0
      %v2128 = vmul.f32 %v2096, %v2120
      %v2129 = vmul.f32 %v2097, %v2121
      %v2130 = vmul.f32 %v2098, %v2122
      %v2131 = vmul.f32 %v2099, %v2123
      %v2132 = vmul.f32 %v2100, %v2124
      %v2133 = vmul.f32 %v2101, %v2125
      %v2134 = vmul.f32 %v2102, %v2126
      %v2135 = vmul.f32 %v2103, %v2127
      %v2136 = vpack.c.bf16 %v2132, %v2128
      %v2137 = vpack.c.bf16 %v2133, %v2129
      %v2138 = vpack.c.bf16 %v2134, %v2130
      %v2139 = vpack.c.bf16 %v2135, %v2131
      %v2140 = vld [vmem:[%s6] sm:$0xff]
      %v2141 = vld [vmem:[%s6 + $0x8] sm:$0xf]
      %v2142 = vld [vmem:[%s6 + $0xc] sm:$0xff]
      %v2143 = vld [vmem:[%s6 + $0x14] sm:$0xf]
      %v2144 = vld [vmem:[%s6 + $0x18] sm:$0xff]
      %v2145 = vld [vmem:[%s6 + $0x20] sm:$0xf]
      %v2146 = vld [vmem:[%s6 + $0x24] sm:$0xff]
      %v2147 = vld [vmem:[%s6 + $0x2c] sm:$0xf]
      %v2148 = vld [vmem:[%s6 + $0x30] sm:$0xff]
      %v2149 = vld [vmem:[%s6 + $0x38] sm:$0xf]
      %v2150 = vld [vmem:[%s6 + $0x3c] sm:$0xff]
      %v2151 = vld [vmem:[%s6 + $0x44] sm:$0xf]
      %v2152 = vld [vmem:[%s6 + $0x48] sm:$0xff]
      %v2153 = vld [vmem:[%s6 + $0x50] sm:$0xf]
      %v2154 = vld [vmem:[%s6 + $0x54] sm:$0xff]
      %v2155 = vld [vmem:[%s6 + $0x5c] sm:$0xf]
      %v2156 = vld [vmem:[%s6 + $0x60] sm:$0xff]
      %v2157 = vld [vmem:[%s6 + $0x68] sm:$0xf]
      %v2158 = vld [vmem:[%s6 + $0x6c] sm:$0xff]
      %v2159 = vld [vmem:[%s6 + $0x74] sm:$0xf]
      %v2160 = vld [vmem:[%s6 + $0x78] sm:$0xff]
      %v2161 = vld [vmem:[%s6 + $0x80] sm:$0xf]
      %v2162 = vld [vmem:[%s6 + $0x84] sm:$0xff]
      %v2163 = vld [vmem:[%s6 + $0x8c] sm:$0xf]
      %v2164 = vld [vmem:[%s6 + $0x90] sm:$0xff]
      %v2165 = vld [vmem:[%s6 + $0x98] sm:$0xf]
      %v2166 = vld [vmem:[%s6 + $0x9c] sm:$0xff]
      %v2167 = vld [vmem:[%s6 + $0xa4] sm:$0xf]
      %v2168 = vld [vmem:[%s6 + $0xa8] sm:$0xff]
      %v2169 = vld [vmem:[%s6 + $0xb0] sm:$0xf]
      %v2170 = vld [vmem:[%s6 + $0xb4] sm:$0xff]
      %v2171 = vld [vmem:[%s6 + $0xbc] sm:$0xf]
      %v2172 = vld [vmem:[%s6 + $0xc0] sm:$0xff]
      %v2173 = vld [vmem:[%s6 + $0xc8] sm:$0xf]
      %v2174 = vld [vmem:[%s6 + $0xcc] sm:$0xff]
      %v2175 = vld [vmem:[%s6 + $0xd4] sm:$0xf]
      %v2176 = vld [vmem:[%s6 + $0xd8] sm:$0xff]
      %v2177 = vld [vmem:[%s6 + $0xe0] sm:$0xf]
      %v2178 = vld [vmem:[%s6 + $0xe4] sm:$0xff]
      %v2179 = vld [vmem:[%s6 + $0xec] sm:$0xf]
      %v2180 = vld [vmem:[%s6 + $0xf0] sm:$0xff]
      %v2181 = vld [vmem:[%s6 + $0xf8] sm:$0xf]
      %v2182 = vld [vmem:[%s6 + $0xfc] sm:$0xff]
      %v2183 = vld [vmem:[%s6 + $0x104] sm:$0xf]
      %v2184 = vld [vmem:[%s6 + $0x108] sm:$0xff]
      %v2185 = vld [vmem:[%s6 + $0x110] sm:$0xf]
      %v2186 = vld [vmem:[%s6 + $0x114] sm:$0xff]
      %v2187 = vld [vmem:[%s6 + $0x11c] sm:$0xf]
      %v2188 = vld [vmem:[%s6 + $0x120] sm:$0xff]
      %v2189 = vld [vmem:[%s6 + $0x128] sm:$0xf]
      %v2190 = vld [vmem:[%s6 + $0x12c] sm:$0xff]
      %v2191 = vld [vmem:[%s6 + $0x134] sm:$0xf]
      %v2192 = vld [vmem:[%s6 + $0x138] sm:$0xff]
      %v2193 = vld [vmem:[%s6 + $0x140] sm:$0xf]
      %v2194 = vld [vmem:[%s6 + $0x144] sm:$0xff]
      %v2195 = vld [vmem:[%s6 + $0x14c] sm:$0xf]
      %v2196 = vld [vmem:[%s6 + $0x150] sm:$0xff]
      %v2197 = vld [vmem:[%s6 + $0x158] sm:$0xf]
      %v2198 = vld [vmem:[%s6 + $0x15c] sm:$0xff]
      %v2199 = vld [vmem:[%s6 + $0x164] sm:$0xf]
      %v2200 = vld [vmem:[%s6 + $0x168] sm:$0xff]
      %v2201 = vld [vmem:[%s6 + $0x170] sm:$0xf]
      %v2202 = vld [vmem:[%s6 + $0x174] sm:$0xff]
      %v2203 = vld [vmem:[%s6 + $0x17c] sm:$0xf]
      %v2204 = vld [vmem:[%s6 + $0x180] sm:$0xff]
      %v2205 = vld [vmem:[%s6 + $0x188] sm:$0xf]
      %v2206 = vld [vmem:[%s6 + $0x18c] sm:$0xff]
      %v2207 = vld [vmem:[%s6 + $0x194] sm:$0xf]
      %v2208 = vld [vmem:[%s6 + $0x198] sm:$0xff]
      %v2209 = vld [vmem:[%s6 + $0x1a0] sm:$0xf]
      %v2210 = vld [vmem:[%s6 + $0x1a4] sm:$0xff]
      %v2211 = vld [vmem:[%s6 + $0x1ac] sm:$0xf]
      %v2212 = vld [vmem:[%s6 + $0x1b0] sm:$0xff]
      %v2213 = vld [vmem:[%s6 + $0x1b8] sm:$0xf]
      %v2214 = vld [vmem:[%s6 + $0x1bc] sm:$0xff]
      %v2215 = vld [vmem:[%s6 + $0x1c4] sm:$0xf]
      %v2216 = vld [vmem:[%s6 + $0x1c8] sm:$0xff]
      %v2217 = vld [vmem:[%s6 + $0x1d0] sm:$0xf]
      %v2218 = vld [vmem:[%s6 + $0x1d4] sm:$0xff]
      %v2219 = vld [vmem:[%s6 + $0x1dc] sm:$0xf]
      %v2220 = vld [vmem:[%s6 + $0x1e0] sm:$0xff]
      %v2221 = vld [vmem:[%s6 + $0x1e8] sm:$0xf]
      %v2222 = vld [vmem:[%s6 + $0x1ec] sm:$0xff]
      %v2223 = vld [vmem:[%s6 + $0x1f4] sm:$0xf]
      %v2224 = vld [vmem:[%s6 + $0x1f8] sm:$0xff]
      %v2225 = vld [vmem:[%s6 + $0x200] sm:$0xf]
      %v2226 = vld [vmem:[%s6 + $0x204] sm:$0xff]
      %v2227 = vld [vmem:[%s6 + $0x20c] sm:$0xf]
      %v2228 = vld [vmem:[%s6 + $0x210] sm:$0xff]
      %v2229 = vld [vmem:[%s6 + $0x218] sm:$0xf]
      %v2230 = vld [vmem:[%s6 + $0x21c] sm:$0xff]
      %v2231 = vld [vmem:[%s6 + $0x224] sm:$0xf]
      %v2232 = vld [vmem:[%s6 + $0x228] sm:$0xff]
      %v2233 = vld [vmem:[%s6 + $0x230] sm:$0xf]
      %v2234 = vld [vmem:[%s6 + $0x234] sm:$0xff]
      %v2235 = vld [vmem:[%s6 + $0x23c] sm:$0xf]
      %v2236 = vld [vmem:[%s6 + $0x240] sm:$0xff]
      %v2237 = vld [vmem:[%s6 + $0x248] sm:$0xf]
      %v2238 = vld [vmem:[%s6 + $0x24c] sm:$0xff]
      %v2239 = vld [vmem:[%s6 + $0x254] sm:$0xf]
      %v2240 = vld [vmem:[%s6 + $0x258] sm:$0xff]
      %v2241 = vld [vmem:[%s6 + $0x260] sm:$0xf]
      %v2242 = vld [vmem:[%s6 + $0x264] sm:$0xff]
      %v2243 = vld [vmem:[%s6 + $0x26c] sm:$0xf]
      %v2244 = vld [vmem:[%s6 + $0x270] sm:$0xff]
      %v2245 = vld [vmem:[%s6 + $0x278] sm:$0xf]
      %v2246 = vld [vmem:[%s6 + $0x27c] sm:$0xff]
      %v2247 = vld [vmem:[%s6 + $0x284] sm:$0xf]
      %v2248 = vld [vmem:[%s6 + $0x288] sm:$0xff]
      %v2249 = vld [vmem:[%s6 + $0x290] sm:$0xf]
      %v2250 = vld [vmem:[%s6 + $0x294] sm:$0xff]
      %v2251 = vld [vmem:[%s6 + $0x29c] sm:$0xf]
      %v2252 = vld [vmem:[%s6 + $0x2a0] sm:$0xff]
      %v2253 = vld [vmem:[%s6 + $0x2a8] sm:$0xf]
      %v2254 = vld [vmem:[%s6 + $0x2ac] sm:$0xff]
      %v2255 = vld [vmem:[%s6 + $0x2b4] sm:$0xf]
      %v2256 = vld [vmem:[%s6 + $0x2b8] sm:$0xff]
      %v2257 = vld [vmem:[%s6 + $0x2c0] sm:$0xf]
      %v2258 = vld [vmem:[%s6 + $0x2c4] sm:$0xff]
      %v2259 = vld [vmem:[%s6 + $0x2cc] sm:$0xf]
      %v2260 = vld [vmem:[%s6 + $0x2d0] sm:$0xff]
      %v2261 = vld [vmem:[%s6 + $0x2d8] sm:$0xf]
      %v2262 = vld [vmem:[%s6 + $0x2dc] sm:$0xff]
      %v2263 = vld [vmem:[%s6 + $0x2e4] sm:$0xf]
      %v2264 = vld [vmem:[%s6 + $0x2e8] sm:$0xff]
      %v2265 = vld [vmem:[%s6 + $0x2f0] sm:$0xf]
      %v2266 = vld [vmem:[%s6 + $0x2f4] sm:$0xff]
      %v2267 = vld [vmem:[%s6 + $0x2fc] sm:$0xf]
      %v2268 = vld [vmem:[%s7] sm:$0x7]
      %v2270 = vlaneseq
      %v2271 = vshrl.u32 %v2270, 7
      %v2272 = vsub.s32 0, %v2271
      %v2273 = vrot.slane %v2268, %v2272
      %v2274 = vlaneseq
      %v2275 = vshrl.u32 %v2274, 7
      %v2276 = vsub.s32 1, %v2275
      %v2277 = vrot.slane %v2268, %v2276
      %v2278 = vlaneseq
      %v2279 = vshrl.u32 %v2278, 7
      %v2280 = vsub.s32 2, %v2279
      %v2281 = vrot.slane %v2268, %v2280
      %v2413 = vunpack.c.l.b16 %v2140
      %v2414 = vunpack.c.h.b16 %v2140
      %v2415 = vunpack.c.l.b16 %v2141
      %v2416 = vunpack.c.l.b16 %v2142
      %v2417 = vunpack.c.h.b16 %v2142
      %v2418 = vunpack.c.l.b16 %v2143
      %v2419 = vunpack.c.l.b16 %v2144
      %v2420 = vunpack.c.h.b16 %v2144
      %v2421 = vunpack.c.l.b16 %v2145
      %v2422 = vunpack.c.l.b16 %v2146
      %v2423 = vunpack.c.h.b16 %v2146
      %v2424 = vunpack.c.l.b16 %v2147
      %v2425 = vunpack.c.l.b16 %v2148
      %v2426 = vunpack.c.h.b16 %v2148
      %v2427 = vunpack.c.l.b16 %v2149
      %v2428 = vunpack.c.l.b16 %v2150
      %v2429 = vunpack.c.h.b16 %v2150
      %v2430 = vunpack.c.l.b16 %v2151
      %v2431 = vunpack.c.l.b16 %v2152
      %v2432 = vunpack.c.h.b16 %v2152
      %v2433 = vunpack.c.l.b16 %v2153
      %v2434 = vunpack.c.l.b16 %v2154
      %v2435 = vunpack.c.h.b16 %v2154
      %v2436 = vunpack.c.l.b16 %v2155
      %v2437 = vunpack.c.l.b16 %v2156
      %v2438 = vunpack.c.h.b16 %v2156
      %v2439 = vunpack.c.l.b16 %v2157
      %v2440 = vunpack.c.l.b16 %v2158
      %v2441 = vunpack.c.h.b16 %v2158
      %v2442 = vunpack.c.l.b16 %v2159
      %v2443 = vunpack.c.l.b16 %v2160
      %v2444 = vunpack.c.h.b16 %v2160
      %v2445 = vunpack.c.l.b16 %v2161
      %v2446 = vunpack.c.l.b16 %v2162
      %v2447 = vunpack.c.h.b16 %v2162
      %v2448 = vunpack.c.l.b16 %v2163
      %v2449 = vunpack.c.l.b16 %v2164
      %v2450 = vunpack.c.h.b16 %v2164
      %v2451 = vunpack.c.l.b16 %v2165
      %v2452 = vunpack.c.l.b16 %v2166
      %v2453 = vunpack.c.h.b16 %v2166
      %v2454 = vunpack.c.l.b16 %v2167
      %v2455 = vunpack.c.l.b16 %v2168
      %v2456 = vunpack.c.h.b16 %v2168
      %v2457 = vunpack.c.l.b16 %v2169
      %v2458 = vunpack.c.l.b16 %v2170
      %v2459 = vunpack.c.h.b16 %v2170
      %v2460 = vunpack.c.l.b16 %v2171
      %v2461 = vunpack.c.l.b16 %v2172
      %v2462 = vunpack.c.h.b16 %v2172
      %v2463 = vunpack.c.l.b16 %v2173
      %v2464 = vunpack.c.l.b16 %v2174
      %v2465 = vunpack.c.h.b16 %v2174
      %v2466 = vunpack.c.l.b16 %v2175
      %v2467 = vunpack.c.l.b16 %v2176
      %v2468 = vunpack.c.h.b16 %v2176
      %v2469 = vunpack.c.l.b16 %v2177
      %v2470 = vunpack.c.l.b16 %v2178
      %v2471 = vunpack.c.h.b16 %v2178
      %v2472 = vunpack.c.l.b16 %v2179
      %v2473 = vunpack.c.l.b16 %v2180
      %v2474 = vunpack.c.h.b16 %v2180
      %v2475 = vunpack.c.l.b16 %v2181
      %v2476 = vunpack.c.l.b16 %v2182
      %v2477 = vunpack.c.h.b16 %v2182
      %v2478 = vunpack.c.l.b16 %v2183
      %v2479 = vunpack.c.l.b16 %v2184
      %v2480 = vunpack.c.h.b16 %v2184
      %v2481 = vunpack.c.l.b16 %v2185
      %v2482 = vunpack.c.l.b16 %v2186
      %v2483 = vunpack.c.h.b16 %v2186
      %v2484 = vunpack.c.l.b16 %v2187
      %v2485 = vunpack.c.l.b16 %v2188
      %v2486 = vunpack.c.h.b16 %v2188
      %v2487 = vunpack.c.l.b16 %v2189
      %v2488 = vunpack.c.l.b16 %v2190
      %v2489 = vunpack.c.h.b16 %v2190
      %v2490 = vunpack.c.l.b16 %v2191
      %v2491 = vunpack.c.l.b16 %v2192
      %v2492 = vunpack.c.h.b16 %v2192
      %v2493 = vunpack.c.l.b16 %v2193
      %v2494 = vunpack.c.l.b16 %v2194
      %v2495 = vunpack.c.h.b16 %v2194
      %v2496 = vunpack.c.l.b16 %v2195
      %v2497 = vunpack.c.l.b16 %v2196
      %v2498 = vunpack.c.h.b16 %v2196
      %v2499 = vunpack.c.l.b16 %v2197
      %v2500 = vunpack.c.l.b16 %v2198
      %v2501 = vunpack.c.h.b16 %v2198
      %v2502 = vunpack.c.l.b16 %v2199
      %v2503 = vunpack.c.l.b16 %v2200
      %v2504 = vunpack.c.h.b16 %v2200
      %v2505 = vunpack.c.l.b16 %v2201
      %v2506 = vunpack.c.l.b16 %v2202
      %v2507 = vunpack.c.h.b16 %v2202
      %v2508 = vunpack.c.l.b16 %v2203
      %v2509 = vunpack.c.l.b16 %v2204
      %v2510 = vunpack.c.h.b16 %v2204
      %v2511 = vunpack.c.l.b16 %v2205
      %v2512 = vunpack.c.l.b16 %v2206
      %v2513 = vunpack.c.h.b16 %v2206
      %v2514 = vunpack.c.l.b16 %v2207
      %v2515 = vunpack.c.l.b16 %v2208
      %v2516 = vunpack.c.h.b16 %v2208
      %v2517 = vunpack.c.l.b16 %v2209
      %v2518 = vunpack.c.l.b16 %v2210
      %v2519 = vunpack.c.h.b16 %v2210
      %v2520 = vunpack.c.l.b16 %v2211
      %v2521 = vunpack.c.l.b16 %v2212
      %v2522 = vunpack.c.h.b16 %v2212
      %v2523 = vunpack.c.l.b16 %v2213
      %v2524 = vunpack.c.l.b16 %v2214
      %v2525 = vunpack.c.h.b16 %v2214
      %v2526 = vunpack.c.l.b16 %v2215
      %v2527 = vunpack.c.l.b16 %v2216
      %v2528 = vunpack.c.h.b16 %v2216
      %v2529 = vunpack.c.l.b16 %v2217
      %v2530 = vunpack.c.l.b16 %v2218
      %v2531 = vunpack.c.h.b16 %v2218
      %v2532 = vunpack.c.l.b16 %v2219
      %v2533 = vunpack.c.l.b16 %v2220
      %v2534 = vunpack.c.h.b16 %v2220
      %v2535 = vunpack.c.l.b16 %v2221
      %v2536 = vunpack.c.l.b16 %v2222
      %v2537 = vunpack.c.h.b16 %v2222
      %v2538 = vunpack.c.l.b16 %v2223
      %v2539 = vunpack.c.l.b16 %v2224
      %v2540 = vunpack.c.h.b16 %v2224
      %v2541 = vunpack.c.l.b16 %v2225
      %v2542 = vunpack.c.l.b16 %v2226
      %v2543 = vunpack.c.h.b16 %v2226
      %v2544 = vunpack.c.l.b16 %v2227
      %v2545 = vunpack.c.l.b16 %v2228
      %v2546 = vunpack.c.h.b16 %v2228
      %v2547 = vunpack.c.l.b16 %v2229
      %v2548 = vunpack.c.l.b16 %v2230
      %v2549 = vunpack.c.h.b16 %v2230
      %v2550 = vunpack.c.l.b16 %v2231
      %v2551 = vunpack.c.l.b16 %v2232
      %v2552 = vunpack.c.h.b16 %v2232
      %v2553 = vunpack.c.l.b16 %v2233
      %v2554 = vunpack.c.l.b16 %v2234
      %v2555 = vunpack.c.h.b16 %v2234
      %v2556 = vunpack.c.l.b16 %v2235
      %v2557 = vunpack.c.l.b16 %v2236
      %v2558 = vunpack.c.h.b16 %v2236
      %v2559 = vunpack.c.l.b16 %v2237
      %v2560 = vunpack.c.l.b16 %v2238
      %v2561 = vunpack.c.h.b16 %v2238
      %v2562 = vunpack.c.l.b16 %v2239
      %v2563 = vunpack.c.l.b16 %v2240
      %v2564 = vunpack.c.h.b16 %v2240
      %v2565 = vunpack.c.l.b16 %v2241
      %v2566 = vunpack.c.l.b16 %v2242
      %v2567 = vunpack.c.h.b16 %v2242
      %v2568 = vunpack.c.l.b16 %v2243
      %v2569 = vunpack.c.l.b16 %v2244
      %v2570 = vunpack.c.h.b16 %v2244
      %v2571 = vunpack.c.l.b16 %v2245
      %v2572 = vunpack.c.l.b16 %v2246
      %v2573 = vunpack.c.h.b16 %v2246
      %v2574 = vunpack.c.l.b16 %v2247
      %v2575 = vunpack.c.l.b16 %v2248
      %v2576 = vunpack.c.h.b16 %v2248
      %v2577 = vunpack.c.l.b16 %v2249
      %v2578 = vunpack.c.l.b16 %v2250
      %v2579 = vunpack.c.h.b16 %v2250
      %v2580 = vunpack.c.l.b16 %v2251
      %v2581 = vunpack.c.l.b16 %v2252
      %v2582 = vunpack.c.h.b16 %v2252
      %v2583 = vunpack.c.l.b16 %v2253
      %v2584 = vunpack.c.l.b16 %v2254
      %v2585 = vunpack.c.h.b16 %v2254
      %v2586 = vunpack.c.l.b16 %v2255
      %v2587 = vunpack.c.l.b16 %v2256
      %v2588 = vunpack.c.h.b16 %v2256
      %v2589 = vunpack.c.l.b16 %v2257
      %v2590 = vunpack.c.l.b16 %v2258
      %v2591 = vunpack.c.h.b16 %v2258
      %v2592 = vunpack.c.l.b16 %v2259
      %v2593 = vunpack.c.l.b16 %v2260
      %v2594 = vunpack.c.h.b16 %v2260
      %v2595 = vunpack.c.l.b16 %v2261
      %v2596 = vunpack.c.l.b16 %v2262
      %v2597 = vunpack.c.h.b16 %v2262
      %v2598 = vunpack.c.l.b16 %v2263
      %v2599 = vunpack.c.l.b16 %v2264
      %v2600 = vunpack.c.h.b16 %v2264
      %v2601 = vunpack.c.l.b16 %v2265
      %v2602 = vunpack.c.l.b16 %v2266
      %v2603 = vunpack.c.h.b16 %v2266
      %v2604 = vunpack.c.l.b16 %v2267
      %v2605 = vpack.c.b16 %v2416, %v2413
      %v2606 = vpack.c.b16 %v2417, %v2414
      %v2607 = vpack.c.b16 %v2418, %v2415
      %v2608 = vpack.c.b16 %v2422, %v2419
      %v2609 = vpack.c.b16 %v2423, %v2420
      %v2610 = vpack.c.b16 %v2424, %v2421
      %v2611 = vpack.c.b16 %v2428, %v2425
      %v2612 = vpack.c.b16 %v2429, %v2426
      %v2613 = vpack.c.b16 %v2430, %v2427
      %v2614 = vpack.c.b16 %v2434, %v2431
      %v2615 = vpack.c.b16 %v2435, %v2432
      %v2616 = vpack.c.b16 %v2436, %v2433
      %v2617 = vpack.c.b16 %v2440, %v2437
      %v2618 = vpack.c.b16 %v2441, %v2438
      %v2619 = vpack.c.b16 %v2442, %v2439
      %v2620 = vpack.c.b16 %v2446, %v2443
      %v2621 = vpack.c.b16 %v2447, %v2444
      %v2622 = vpack.c.b16 %v2448, %v2445
      %v2623 = vpack.c.b16 %v2452, %v2449
      %v2624 = vpack.c.b16 %v2453, %v2450
      %v2625 = vpack.c.b16 %v2454, %v2451
      %v2626 = vpack.c.b16 %v2458, %v2455
      %v2627 = vpack.c.b16 %v2459, %v2456
      %v2628 = vpack.c.b16 %v2460, %v2457
      %v2629 = vpack.c.b16 %v2464, %v2461
      %v2630 = vpack.c.b16 %v2465, %v2462
      %v2631 = vpack.c.b16 %v2466, %v2463
      %v2632 = vpack.c.b16 %v2470, %v2467
      %v2633 = vpack.c.b16 %v2471, %v2468
      %v2634 = vpack.c.b16 %v2472, %v2469
      %v2635 = vpack.c.b16 %v2476, %v2473
      %v2636 = vpack.c.b16 %v2477, %v2474
      %v2637 = vpack.c.b16 %v2478, %v2475
      %v2638 = vpack.c.b16 %v2482, %v2479
      %v2639 = vpack.c.b16 %v2483, %v2480
      %v2640 = vpack.c.b16 %v2484, %v2481
      %v2641 = vpack.c.b16 %v2488, %v2485
      %v2642 = vpack.c.b16 %v2489, %v2486
      %v2643 = vpack.c.b16 %v2490, %v2487
      %v2644 = vpack.c.b16 %v2494, %v2491
      %v2645 = vpack.c.b16 %v2495, %v2492
      %v2646 = vpack.c.b16 %v2496, %v2493
      %v2647 = vpack.c.b16 %v2500, %v2497
      %v2648 = vpack.c.b16 %v2501, %v2498
      %v2649 = vpack.c.b16 %v2502, %v2499
      %v2650 = vpack.c.b16 %v2506, %v2503
      %v2651 = vpack.c.b16 %v2507, %v2504
      %v2652 = vpack.c.b16 %v2508, %v2505
      %v2653 = vpack.c.b16 %v2512, %v2509
      %v2654 = vpack.c.b16 %v2513, %v2510
      %v2655 = vpack.c.b16 %v2514, %v2511
      %v2656 = vpack.c.b16 %v2518, %v2515
      %v2657 = vpack.c.b16 %v2519, %v2516
      %v2658 = vpack.c.b16 %v2520, %v2517
      %v2659 = vpack.c.b16 %v2524, %v2521
      %v2660 = vpack.c.b16 %v2525, %v2522
      %v2661 = vpack.c.b16 %v2526, %v2523
      %v2662 = vpack.c.b16 %v2530, %v2527
      %v2663 = vpack.c.b16 %v2531, %v2528
      %v2664 = vpack.c.b16 %v2532, %v2529
      %v2665 = vpack.c.b16 %v2536, %v2533
      %v2666 = vpack.c.b16 %v2537, %v2534
      %v2667 = vpack.c.b16 %v2538, %v2535
      %v2668 = vpack.c.b16 %v2542, %v2539
      %v2669 = vpack.c.b16 %v2543, %v2540
      %v2670 = vpack.c.b16 %v2544, %v2541
      %v2671 = vpack.c.b16 %v2548, %v2545
      %v2672 = vpack.c.b16 %v2549, %v2546
      %v2673 = vpack.c.b16 %v2550, %v2547
      %v2674 = vpack.c.b16 %v2554, %v2551
      %v2675 = vpack.c.b16 %v2555, %v2552
      %v2676 = vpack.c.b16 %v2556, %v2553
      %v2677 = vpack.c.b16 %v2560, %v2557
      %v2678 = vpack.c.b16 %v2561, %v2558
      %v2679 = vpack.c.b16 %v2562, %v2559
      %v2680 = vpack.c.b16 %v2566, %v2563
      %v2681 = vpack.c.b16 %v2567, %v2564
      %v2682 = vpack.c.b16 %v2568, %v2565
      %v2683 = vpack.c.b16 %v2572, %v2569
      %v2684 = vpack.c.b16 %v2573, %v2570
      %v2685 = vpack.c.b16 %v2574, %v2571
      %v2686 = vpack.c.b16 %v2578, %v2575
      %v2687 = vpack.c.b16 %v2579, %v2576
      %v2688 = vpack.c.b16 %v2580, %v2577
      %v2689 = vpack.c.b16 %v2584, %v2581
      %v2690 = vpack.c.b16 %v2585, %v2582
      %v2691 = vpack.c.b16 %v2586, %v2583
      %v2692 = vpack.c.b16 %v2590, %v2587
      %v2693 = vpack.c.b16 %v2591, %v2588
      %v2694 = vpack.c.b16 %v2592, %v2589
      %v2695 = vpack.c.b16 %v2596, %v2593
      %v2696 = vpack.c.b16 %v2597, %v2594
      %v2697 = vpack.c.b16 %v2598, %v2595
      %v2698 = vpack.c.b16 %v2602, %v2599
      %v2699 = vpack.c.b16 %v2603, %v2600
      %v2700 = vpack.c.b16 %v2604, %v2601
      %2797 = vmatprep.subr.bf16.mxu0 %v2606
      %2798 = vmatpush1.bf16.msra.mxu0 %v2605
      %2799 = vmatprep.subr.bf16.mxu0 %v2609
      %2800 = vmatpush1.bf16.msra.mxu0 %v2608
      %2801 = vmatprep.subr.bf16.mxu0 %v2612
      %2802 = vmatpush1.bf16.msra.mxu0 %v2611
      %2803 = vmatprep.subr.bf16.mxu0 %v2615
      %2804 = vmatpush1.bf16.msra.mxu0 %v2614
      %2805 = vmatprep.subr.bf16.mxu0 %v2618
      %2806 = vmatpush1.bf16.msra.mxu0 %v2617
      %2807 = vmatprep.subr.bf16.mxu0 %v2621
      %2808 = vmatpush1.bf16.msra.mxu0 %v2620
      %2809 = vmatprep.subr.bf16.mxu0 %v2624
      %2810 = vmatpush1.bf16.msra.mxu0 %v2623
      %2811 = vmatprep.subr.bf16.mxu0 %v2627
      %2812 = vmatpush1.bf16.msra.mxu0 %v2626
      %2813 = vmatprep.subr.bf16.mxu0 %v2630
      %2814 = vmatpush1.bf16.msra.mxu0 %v2629
      %2815 = vmatprep.subr.bf16.mxu0 %v2633
      %2816 = vmatpush1.bf16.msra.mxu0 %v2632
      %2817 = vmatprep.subr.bf16.mxu0 %v2636
      %2818 = vmatpush1.bf16.msra.mxu0 %v2635
      %2819 = vmatprep.subr.bf16.mxu0 %v2639
      %2820 = vmatpush1.bf16.msra.mxu0 %v2638
      %2821 = vmatprep.subr.bf16.mxu0 %v2642
      %2822 = vmatpush1.bf16.msra.mxu0 %v2641
      %2823 = vmatprep.subr.bf16.mxu0 %v2645
      %2824 = vmatpush1.bf16.msra.mxu0 %v2644
      %2825 = vmatprep.subr.bf16.mxu0 %v2648
      %2826 = vmatpush1.bf16.msra.mxu0 %v2647
      %2827 = vmatprep.subr.bf16.mxu0 %v2651
      %2828 = vmatpush1.bf16.msra.mxu0 %v2650
      %2829 = vmatprep.mubr.bf16.mxu0 %v2137
      %2830 = vmatmul.mubr.bf16.gmra.mrb[0].mxu0 %v2136
      %v2831 = vpop.f32.mrb[0].mxu0
      %v2832 = vadd.f32 %v2273, %v2831
      %v2833 = vpop.f32.mrb[0].mxu0
      %v2834 = vadd.f32 %v2277, %v2833
      %v2835 = vpop.f32.mrb[0].mxu0
      %v2836 = vadd.f32 %v2273, %v2835
      %v2837 = vpop.f32.mrb[0].mxu0
      %v2838 = vadd.f32 %v2277, %v2837
      %2839 = vdwg.mxu0
      %2840 = vmatprep.subr.bf16.mxu0 %v2654
      %2841 = vmatpush1.bf16.msra.mxu0 %v2653
      %2842 = vmatprep.subr.bf16.mxu0 %v2657
      %2843 = vmatpush1.bf16.msra.mxu0 %v2656
      %2844 = vmatprep.subr.bf16.mxu0 %v2660
      %2845 = vmatpush1.bf16.msra.mxu0 %v2659
      %2846 = vmatprep.subr.bf16.mxu0 %v2663
      %2847 = vmatpush1.bf16.msra.mxu0 %v2662
      %2848 = vmatprep.subr.bf16.mxu0 %v2666
      %2849 = vmatpush1.bf16.msra.mxu0 %v2665
      %2850 = vmatprep.subr.bf16.mxu0 %v2669
      %2851 = vmatpush1.bf16.msra.mxu0 %v2668
      %2852 = vmatprep.subr.bf16.mxu0 %v2672
      %2853 = vmatpush1.bf16.msra.mxu0 %v2671
      %2854 = vmatprep.subr.bf16.mxu0 %v2675
      %2855 = vmatpush1.bf16.msra.mxu0 %v2674
      %2856 = vmatprep.subr.bf16.mxu0 %v2678
      %2857 = vmatpush1.bf16.msra.mxu0 %v2677
      %2858 = vmatprep.subr.bf16.mxu0 %v2681
      %2859 = vmatpush1.bf16.msra.mxu0 %v2680
      %2860 = vmatprep.subr.bf16.mxu0 %v2684
      %2861 = vmatpush1.bf16.msra.mxu0 %v2683
      %2862 = vmatprep.subr.bf16.mxu0 %v2687
      %2863 = vmatpush1.bf16.msra.mxu0 %v2686
      %2864 = vmatprep.subr.bf16.mxu0 %v2690
      %2865 = vmatpush1.bf16.msra.mxu0 %v2689
      %2866 = vmatprep.subr.bf16.mxu0 %v2693
      %2867 = vmatpush1.bf16.msra.mxu0 %v2692
      %2868 = vmatprep.subr.bf16.mxu0 %v2696
      %2869 = vmatpush1.bf16.msra.mxu0 %v2695
      %2870 = vmatprep.subr.bf16.mxu0 %v2699
      %2871 = vmatpush1.bf16.msra.mxu0 %v2698
      %2872 = vmatprep.mubr.bf16.mxu0 %v2139
      %2873 = vmatmul.mubr.bf16.gmra.mrb[0].mxu0 %v2138
      %v2874 = vpop.f32.mrb[0].mxu0
      %v2875 = vadd.f32 %v2832, %v2874
      %v2876 = vpop.f32.mrb[0].mxu0
      %v2877 = vadd.f32 %v2834, %v2876
      %v2878 = vpop.f32.mrb[0].mxu0
      %v2879 = vadd.f32 %v2836, %v2878
      %v2880 = vpop.f32.mrb[0].mxu0
      %v2881 = vadd.f32 %v2838, %v2880
      %2882 = vdwg.mxu0
      %2883 = vmatprep.subr.bf16.mxu0 0
      %2884 = vmatpush1.bf16.msra.mxu0 %v2607
      %2885 = vmatprep.subr.bf16.mxu0 0
      %2886 = vmatpush1.bf16.msra.mxu0 %v2610
      %2887 = vmatprep.subr.bf16.mxu0 0
      %2888 = vmatpush1.bf16.msra.mxu0 %v2613
      %2889 = vmatprep.subr.bf16.mxu0 0
      %2890 = vmatpush1.bf16.msra.mxu0 %v2616
      %2891 = vmatprep.subr.bf16.mxu0 0
      %2892 = vmatpush1.bf16.msra.mxu0 %v2619
      %2893 = vmatprep.subr.bf16.mxu0 0
      %2894 = vmatpush1.bf16.msra.mxu0 %v2622
      %2895 = vmatprep.subr.bf16.mxu0 0
      %2896 = vmatpush1.bf16.msra.mxu0 %v2625
      %2897 = vmatprep.subr.bf16.mxu0 0
      %2898 = vmatpush1.bf16.msra.mxu0 %v2628
      %2899 = vmatprep.subr.bf16.mxu0 0
      %2900 = vmatpush1.bf16.msra.mxu0 %v2631
      %2901 = vmatprep.subr.bf16.mxu0 0
      %2902 = vmatpush1.bf16.msra.mxu0 %v2634
      %2903 = vmatprep.subr.bf16.mxu0 0
      %2904 = vmatpush1.bf16.msra.mxu0 %v2637
      %2905 = vmatprep.subr.bf16.mxu0 0
      %2906 = vmatpush1.bf16.msra.mxu0 %v2640
      %2907 = vmatprep.subr.bf16.mxu0 0
      %2908 = vmatpush1.bf16.msra.mxu0 %v2643
      %2909 = vmatprep.subr.bf16.mxu0 0
      %2910 = vmatpush1.bf16.msra.mxu0 %v2646
      %2911 = vmatprep.subr.bf16.mxu0 0
      %2912 = vmatpush1.bf16.msra.mxu0 %v2649
      %2913 = vmatprep.subr.bf16.mxu0 0
      %2914 = vmatpush1.bf16.msra.mxu0 %v2652
      %2915 = vmatprep.mubr.bf16.mxu0 %v2137
      %2916 = vmatmul.mubr.bf16.gmra.mrb[0].mxu0 %v2136
      %v2917 = vpop.f32.mrb[0].mxu0
      %v2918 = vadd.f32 %v2281, %v2917
      %v2919 = vpop.f32.mrb[0].mxu0
      %v2920 = vpop.f32.mrb[0].mxu0
      %v2921 = vadd.f32 %v2281, %v2920
      %v2922 = vpop.f32.mrb[0].mxu0
      %2923 = vdwg.mxu0
      %2924 = vmatprep.subr.bf16.mxu0 0
      %2925 = vmatpush1.bf16.msra.mxu0 %v2655
      %2926 = vmatprep.subr.bf16.mxu0 0
      %2927 = vmatpush1.bf16.msra.mxu0 %v2658
      %2928 = vmatprep.subr.bf16.mxu0 0
      %2929 = vmatpush1.bf16.msra.mxu0 %v2661
      %2930 = vmatprep.subr.bf16.mxu0 0
      %2931 = vmatpush1.bf16.msra.mxu0 %v2664
      %2932 = vmatprep.subr.bf16.mxu0 0
      %2933 = vmatpush1.bf16.msra.mxu0 %v2667
      %2934 = vmatprep.subr.bf16.mxu0 0
      %2935 = vmatpush1.bf16.msra.mxu0 %v2670
      %2936 = vmatprep.subr.bf16.mxu0 0
      %2937 = vmatpush1.bf16.msra.mxu0 %v2673
      %2938 = vmatprep.subr.bf16.mxu0 0
      %2939 = vmatpush1.bf16.msra.mxu0 %v2676
      %2940 = vmatprep.subr.bf16.mxu0 0
      %2941 = vmatpush1.bf16.msra.mxu0 %v2679
      %2942 = vmatprep.subr.bf16.mxu0 0
      %2943 = vmatpush1.bf16.msra.mxu0 %v2682
      %2944 = vmatprep.subr.bf16.mxu0 0
      %2945 = vmatpush1.bf16.msra.mxu0 %v2685
      %2946 = vmatprep.subr.bf16.mxu0 0
      %2947 = vmatpush1.bf16.msra.mxu0 %v2688
      %2948 = vmatprep.subr.bf16.mxu0 0
      %2949 = vmatpush1.bf16.msra.mxu0 %v2691
      %2950 = vmatprep.subr.bf16.mxu0 0
      %2951 = vmatpush1.bf16.msra.mxu0 %v2694
      %2952 = vmatprep.subr.bf16.mxu0 0
      %2953 = vmatpush1.bf16.msra.mxu0 %v2697
      %2954 = vmatprep.subr.bf16.mxu0 0
      %2955 = vmatpush1.bf16.msra.mxu0 %v2700
      %2956 = vmatprep.mubr.bf16.mxu0 %v2139
      %2957 = vmatmul.mubr.bf16.gmra.mrb[0].mxu0 %v2138
      %v2958 = vpop.f32.mrb[0].mxu0
      %v2959 = vadd.f32 %v2918, %v2958
      %v2960 = vpop.f32.mrb[0].mxu0
      %v2961 = vpop.f32.mrb[0].mxu0
      %v2962 = vadd.f32 %v2921, %v2961
      %v2963 = vpop.f32.mrb[0].mxu0
      %2964 = vdwg.mxu0
      %v2965 = vld [vmem:[%s330] sm:$0xff]
      %v2966 = vld [vmem:[%s330 + $0x8] sm:$0xff]
      %v2967 = vld [vmem:[%s330 + $0x10] sm:$0xff]
      %v2968 = vld [vmem:[%s330 + $0x18] sm:$0xff]
      %v2969 = vld [vmem:[%s330 + $0x20] sm:$0xff]
      %v2970 = vld [vmem:[%s330 + $0x28] sm:$0xff]
      %v2971 = vmul.f32 %v2875, %v2965
      %v2972 = vmul.f32 %v2877, %v2966
      %v2973 = vmul.f32 %v2959, %v2967
      %v2974 = vmul.f32 %v2879, %v2968
      %v2975 = vmul.f32 %v2881, %v2969
      %v2976 = vmul.f32 %v2962, %v2970
      %2977 = vst [vmem:[%s337] sm:$0xff] %v2971
      %2978 = vst [vmem:[%s337 + $0x8] sm:$0xff] %v2972
      %2979 = vst [vmem:[%s337 + $0x10] sm:$0xff] %v2973
      %2980 = vst [vmem:[%s337 + $0x18] sm:$0xff] %v2974
      %2981 = vst [vmem:[%s337 + $0x20] sm:$0xff] %v2975
      %2982 = vst [vmem:[%s337 + $0x28] sm:$0xff] %v2976
      %s2983 = smul.u32 2, %s19
      %p2984 = scmp.lt.s32.totalorder %s2983, 5
      %s2985 = scalar_select %p2984, %s2983, 5
      %s2986 = smul.addr %s2985, 3
      %s2987 = smul.addr %s2986, 8
      %s2988 = scalar_lea.vmem %s8, %s2987
      // Predicated region
      $region53: #{draftnet_forward.1} parent=51 // pred_check
        %p2989 = pneg %p215
      $region54: #{draftnet_forward.1} parent=51 // pred_check_branch
        %2991 = sbr.rel (%p2989) target = $region56
      $region55: #{draftnet_forward.1} parent=51 // pred_region
        %s2992 = smul.u32 2, %s19
      $region56: #{draftnet_forward.1} parent=51 // pred_fallthru
        _
    $region52: #{draftnet_forward.1} parent=5 // pred_fallthru
      _
    %p2993 = scmp.le.s32.totalorder 2, %s14
    // Predicated region
    $region57: #{draftnet_forward.1} parent=5 // pred_check
      %p2994 = pneg %p2993
    $region58: #{draftnet_forward.1} parent=5 // pred_check_branch
      %2996 = sbr.rel (%p2994) target = $region60
    $region59: #{draftnet_forward.1} parent=5 // pred_region
      %s2997 = ssub.s32 %s14, 2
      // Predicated region
      $region61: #{draftnet_forward.1} parent=59 // pred_check
        %p2998 = pneg %p221
      $region62: #{draftnet_forward.1} parent=59 // pred_check_branch
        %3000 = sbr.rel (%p2998) target = $region64
      $region63: #{draftnet_forward.1} parent=59 // pred_region
        %s3001 = smul.u32 2, %s20
        %p3002 = scmp.lt.s32.totalorder %s3001, 5
        %s3003 = scalar_select %p3002, %s3001, 5
        %s3004 = smul.addr %s3003, 3
        %s3005 = smul.addr %s3004, 8
        %s3006 = scalar_lea.vmem %s8, %s3005
      $region64: #{draftnet_forward.1} parent=59 // pred_fallthru
        _
    $region60: #{draftnet_forward.1} parent=5 // pred_fallthru
      _
  $region6: #{draftnet_forward.1} parent=0 // loop_footer
    %s18 = sadd.s32 1, %s14
  $region7: #{draftnet_forward.1} parent=0 // loop_footer_branch
    %13 = sbr.rel target = $region3
  $region8: #{draftnet_forward.1} parent=0 // loop_exit
    _

</llo_original>
